<compile_context>
chip_gen: v5e
topology: v5e:2x2
jax: 0.10.0
libtpu: 0.0.40
codegen_flags: <defaults>
</compile_context>

<pallas_src>
import functools
from typing import NamedTuple

import jax
import jax.numpy as jnp
from jax.experimental import pallas as pl
from jax.experimental.pallas import tpu as pltpu

LANE = 128


def _round_up(x, m):
    return (x + m - 1) // m * m


def _pad2d(a, rows, cols):
    out = jnp.zeros((rows, cols), a.dtype)
    return out.at[: a.shape[0], : a.shape[1]].set(a)


def _choose_tiles(n):
    """Pick (tm, tk, padded_n).  Big graphs: 512x1024 tiles; small graphs use a
    single tile so padding never balloons to tk (perf-review item 9)."""
    np_min = _round_up(max(n, 1), 128)
    if np_min < 1024:
        return np_min, np_min, np_min
    np_ = _round_up(n, 512)
    tm = 512
    tk = 1024 if np_ % 1024 == 0 else 512
    return tm, tk, np_


class GraphData(NamedTuple):
    a_struct: jax.Array     # (np_, np_) int8, (A + I), zero-padded
    d_inv_sqrt: jax.Array   # (np_, 1) f32, 0 for padded rows
    num_nodes: int
    np_: int
    tm: int
    tk: int


def prepare_graph(edge_index, num_nodes):
    """One-time per-graph prep: padded int8 (A+I) structure and D^{-1/2}.

    A_hat = diag(dis) @ (A+I) @ diag(dis); the diag factors are applied inside
    the kernel (row pre-scale of M, row post-scale of the accumulator), so only
    the exact integer structure has to be streamed from HBM at forward time.
    """
    tm, tk, np_ = _choose_tiles(num_nodes)
    src, dst = edge_index[0], edge_index[1]
    a = jnp.zeros((np_, np_), jnp.float32)
    a = a.at[dst, src].add(1.0)                      # messages flow src -> dst
    diag = jnp.arange(num_nodes)
    a = a.at[diag, diag].add(1.0)                    # self loops (real nodes only)
    deg = a.sum(axis=1)                              # padded rows -> 0
    d_inv_sqrt = jnp.where(deg > 0.0, 1.0 / jnp.sqrt(deg), 0.0)
    return GraphData(
        a_struct=a.astype(jnp.int8),                 # small ints -> exact cast
        d_inv_sqrt=d_inv_sqrt[:, None].astype(jnp.float32),
        num_nodes=num_nodes, np_=np_, tm=tm, tk=tk)


def build_normalized_adjacency(edge_index, num_nodes):
    """Dense f32 D^{-1/2}(A+I)D^{-1/2} (reference / validation only)."""
    src, dst = edge_index[0], edge_index[1]
    a = jnp.zeros((num_nodes, num_nodes), jnp.float32)
    a = a.at[dst, src].add(1.0)
    a = a + jnp.eye(num_nodes, dtype=jnp.float32)
    deg = a.sum(axis=1)
    d_inv_sqrt = jnp.where(deg > 0, 1.0 / jnp.sqrt(deg), 0.0)
    return d_inv_sqrt[:, None] * a * d_inv_sqrt[None, :]


def _vmem_limit_bytes(np_, cp, tm, tk, *, fused):
    """Footprint-derived scoped-VMEM limit, capped by chip capacity."""
    tile_bytes = (
        2 * tm * tk * 1          # int8 (A+I) tiles, double-buffered
        + 2 * tk * cp * 2        # M (X_pre / H_pre) bf16 tiles, double-buffered
        + 2 * 2 * cp * cp * 2    # weight tiles (W1 & W2), double-buffered bf16
        + 2 * 2 * 8 * cp * 4     # bias tiles (pad to 8 sublanes), f32
        + 2 * tm * LANE * 4      # d^{-1/2} (tm,1) pads to 128 lanes, f32
        + tm * cp * 4            # f32 accumulator scratch
        + 2 * tm * cp * 4        # output tiles, double-buffered f32
    )
    need = tile_bytes + (np_ * cp * 2 if fused else 0)   # fused: VMEM-resident H_pre
    try:
        cap = int(pltpu.get_tpu_info().vmem_capacity_bytes)
    except Exception:
        cap = 64 * 1024 * 1024   # conservative (v7x-sized) fallback
    cap_eff = cap - 12 * 1024 * 1024
    if need + 4 * 1024 * 1024 > cap_eff:
        # TODO(synk): automatic spill-H-to-HBM fallback instead of raising.
        raise ValueError(
            "GCN fused path: VMEM-resident H scratch does not fit on this chip "
            f"(need ~{need >> 20} MiB, VMEM ~{cap >> 20} MiB); call "
            "gcn_forward(..., fused=False) to round-trip H through HBM.")
    return min(max(need + 8 * 1024 * 1024, 32 * 1024 * 1024), cap_eff)


# ---------------------------------------------------------------------------
# Fused 2-layer kernel (single pallas_call, H kept in VMEM) — 1-TC chips.
# ---------------------------------------------------------------------------
def _fused_gcn_kernel(a_ref, x_ref, w1_ref, w2_ref, b1_ref, b2_ref, dis_ref,
                      o_ref, h_ref, acc_ref):
    l = pl.program_id(0)           # layer: 0 -> conv1 + relu, 1 -> conv2
    i = pl.program_id(1)           # node row tile
    k = pl.program_id(2)           # reduce tile over (A+I) columns
    nk = pl.num_programs(2)
    tm = acc_ref.shape[0]
    tk = a_ref.shape[1]

    @pl.when(k == 0)
    def _():
        acc_ref[...] = jnp.zeros_like(acc_ref)

    # int8 structure -> bf16 in VMEM (exact 0/1 values); HBM streamed as int8.
    a_bf = a_ref[...].astype(jnp.bfloat16)

    # acc += (A+I)[i,k] @ M_pre[k]   (M_pre = dis*X for layer 1, VMEM H_pre for layer 2)
    @pl.when(l == 0)
    def _():
        acc_ref[...] += jnp.dot(a_bf, x_ref[...],
                                preferred_element_type=jnp.float32)

    @pl.when(l == 1)
    def _():
        row0 = pl.multiple_of(k * tk, tk)
        acc_ref[...] += jnp.dot(a_bf, h_ref[pl.ds(row0, tk), :],
                                preferred_element_type=jnp.float32)

    # Epilogue on the last reduce step: row post-scale, @W, +b (+relu layer 1).
    @pl.when(k == nk - 1)
    def _():
        dis = dis_ref[...]                       # (tm, 1) f32, 0 on padded rows
        am = (dis * acc_ref[...]).astype(w1_ref.dtype)   # = A_hat @ M rows
        irow0 = pl.multiple_of(i * tm, tm)

        @pl.when(l == 0)
        def _():
            h = jnp.dot(am, w1_ref[...], preferred_element_type=jnp.float32)
            h = jnp.maximum(h + b1_ref[...], 0.0)
            # Store layer-2's pre-scaled input; padded rows are exactly 0.
            h_ref[pl.ds(irow0, tm), :] = (dis * h).astype(h_ref.dtype)

        @pl.when(l == 1)
        def _():
            out = jnp.dot(am, w2_ref[...], preferred_element_type=jnp.float32)
            o_ref[...] = (out + b2_ref[...]).astype(o_ref.dtype)


def _fused_forward(a_struct, x_pre, w1, w2, b1, b2, dis, np_, cp, tm, tk):
    grid = (2, np_ // tm, np_ // tk)   # (layer, row tiles, reduce tiles)
    return pl.pallas_call(
        _fused_gcn_kernel,
        out_shape=jax.ShapeDtypeStruct((np_, cp), jnp.float32),
        grid_spec=pltpu.PrefetchScalarGridSpec(
            num_scalar_prefetch=0,
            grid=grid,
            in_specs=[
                pl.BlockSpec((tm, tk), lambda l, i, k: (i, k)),            # (A+I) int8
                pl.BlockSpec((tk, cp), lambda l, i, k: ((1 - l) * k, 0)),  # X_pre (layer 1)
                pl.BlockSpec((cp, cp), lambda l, i, k: (0, 0)),            # W1
                pl.BlockSpec((cp, cp), lambda l, i, k: (0, 0)),            # W2
                pl.BlockSpec((1, cp), lambda l, i, k: (0, 0)),             # b1
                pl.BlockSpec((1, cp), lambda l, i, k: (0, 0)),             # b2
                pl.BlockSpec((tm, 1), lambda l, i, k: (i, 0)),             # d^{-1/2}
            ],
            # (l*i, 0): during layer 0 the out block index never changes, so no
            # garbage block is ever flushed; only layer-1 epilogue writes land.
            out_specs=pl.BlockSpec((tm, cp), lambda l, i, k: (l * i, 0)),
            scratch_shapes=[
                pltpu.VMEM((np_, cp), jnp.bfloat16),   # H_pre (dis * relu(conv1))
                pltpu.VMEM((tm, cp), jnp.float32),     # f32 accumulator
            ],
        ),
        compiler_params=pltpu.CompilerParams(
            # H scratch is carried across layer & row axes -> all arbitrary.
            dimension_semantics=("arbitrary", "arbitrary", "arbitrary"),
            vmem_limit_bytes=_vmem_limit_bytes(np_, cp, tm, tk, fused=True),
        ),
    )(a_struct, x_pre, w1, w2, b1, b2, dis)


# ---------------------------------------------------------------------------
# Single-layer kernel (un-fused path) — lets the row axis be "parallel" so
# v7x's 2 TensorCores are both used; H round-trips HBM in bf16 (negligible
# next to the O(N^2) structure stream).
# ---------------------------------------------------------------------------
def _gcn_layer_kernel(a_ref, m_ref, w_ref, b_ref, dis_ref, o_ref, acc_ref, *,
                      apply_relu, scale_rows_out):
    k = pl.program_id(1)
    nk = pl.num_programs(1)

    @pl.when(k == 0)
    def _():
        acc_ref[...] = jnp.zeros_like(acc_ref)

    acc_ref[...] += jnp.dot(a_ref[...].astype(m_ref.dtype), m_ref[...],
                            preferred_element_type=jnp.float32)

    @pl.when(k == nk - 1)
    def _():
        dis = dis_ref[...]
        agg = (dis * acc_ref[...]).astype(w_ref.dtype)
        y = jnp.dot(agg, w_ref[...], preferred_element_type=jnp.float32) + b_ref[...]
        if apply_relu:
            y = jnp.maximum(y, 0.0)
        if scale_rows_out:              # write dis * H so layer 2 needs no pre-scale
            y = dis * y
        o_ref[...] = y.astype(o_ref.dtype)


def _layer_forward(a_struct, m, w, b, dis, np_, cp, tm, tk, *,
                   apply_relu, scale_rows_out, out_dtype):
    grid = (np_ // tm, np_ // tk)
    kernel = functools.partial(_gcn_layer_kernel,
                               apply_relu=apply_relu,
                               scale_rows_out=scale_rows_out)
    return pl.pallas_call(
        kernel,
        out_shape=jax.ShapeDtypeStruct((np_, cp), out_dtype),
        grid_spec=pltpu.PrefetchScalarGridSpec(
            num_scalar_prefetch=0,
            grid=grid,
            in_specs=[
                pl.BlockSpec((tm, tk), lambda i, k: (i, k)),   # (A+I) int8
                pl.BlockSpec((tk, cp), lambda i, k: (k, 0)),   # M_pre
                pl.BlockSpec((cp, cp), lambda i, k: (0, 0)),   # W
                pl.BlockSpec((1, cp), lambda i, k: (0, 0)),    # b
                pl.BlockSpec((tm, 1), lambda i, k: (i, 0)),    # d^{-1/2}
            ],
            out_specs=pl.BlockSpec((tm, cp), lambda i, k: (i, 0)),
            scratch_shapes=[pltpu.VMEM((tm, cp), jnp.float32)],
        ),
        compiler_params=pltpu.CompilerParams(
            dimension_semantics=("parallel", "arbitrary"),
            vmem_limit_bytes=_vmem_limit_bytes(np_, cp, tm, tk, fused=False),
        ),
    )(a_struct, m, w, b, dis)


def _default_fused():
    """Fused single-launch on 1-TC chips (v5e/v6e); un-fused on v7x (2 TCs)."""
    try:
        kind = jax.devices()[0].device_kind.lower()
        return "v7" not in kind
    except Exception:
        return True


def gcn_forward(x, graph, params, *, fused=None):
    n = graph.num_nodes
    assert x.shape[0] == n
    c_in = x.shape[1]
    c_out = params["w1"].shape[1]
    assert params["w2"].shape == (c_out, c_out)
    cp = _round_up(max(c_in, c_out), LANE)
    np_, tm, tk = graph.np_, graph.tm, graph.tk
    assert np_ % tm == 0 and np_ % tk == 0

    if fused is None:
        fused = _default_fused()

    dis = graph.d_inv_sqrt                                   # (np_, 1) f32
    x_pre = (dis * _pad2d(x.astype(jnp.float32), np_, cp)).astype(jnp.bfloat16)
    w1_p = _pad2d(params["w1"], cp, cp).astype(jnp.bfloat16)
    w2_p = _pad2d(params["w2"], cp, cp).astype(jnp.bfloat16)
    b1_p = _pad2d(params["b1"].reshape(1, -1), 1, cp).astype(jnp.float32)
    b2_p = _pad2d(params["b2"].reshape(1, -1), 1, cp).astype(jnp.float32)

    if fused:
        out_p = _fused_forward(graph.a_struct, x_pre, w1_p, w2_p, b1_p, b2_p,
                               dis, np_, cp, tm, tk)
    else:
        h_pre = _layer_forward(graph.a_struct, x_pre, w1_p, b1_p, dis,
                               np_, cp, tm, tk, apply_relu=True,
                               scale_rows_out=True, out_dtype=jnp.bfloat16)
        out_p = _layer_forward(graph.a_struct, h_pre, w2_p, b2_p, dis,
                               np_, cp, tm, tk, apply_relu=False,
                               scale_rows_out=False, out_dtype=jnp.float32)

    return out_p[:n, :c_out]


def init_params(key, in_channels, out_channels):
    k1, k2 = jax.random.split(key)
    scale1 = 1.0 / jnp.sqrt(in_channels)
    scale2 = 1.0 / jnp.sqrt(out_channels)
    return {
        "w1": jax.random.uniform(
            k1, (in_channels, out_channels), jnp.float32, -scale1, scale1),
        "b1": jnp.zeros((out_channels,), jnp.float32),
        "w2": jax.random.uniform(
            k2, (out_channels, out_channels), jnp.float32, -scale2, scale2),
        "b2": jnp.zeros((out_channels,), jnp.float32),
    }


if __name__ == "__main__":
    key = jax.random.PRNGKey(0)
    kx, kp = jax.random.split(key)

    num_nodes = 16
    in_channels = 8
    out_channels = 32

    x = jax.random.normal(kx, (num_nodes, in_channels), jnp.float32)

    # Deterministic ring graph (bidirectional edges).
    src = jnp.arange(num_nodes, dtype=jnp.int32)
    dst = (src + 1) % num_nodes
    edge_index = jnp.stack(
        [jnp.concatenate([src, dst]), jnp.concatenate([dst, src])], axis=0
    )

    params = init_params(kp, in_channels, out_channels)
    graph = prepare_graph(edge_index, num_nodes)   # hoisted one-time graph prep

    # Pure-JAX f32 reference of the same math (dense A_hat); tolerance reflects
    # bf16 MXU inputs / f32 accumulation inside the kernel.
    a_hat = build_normalized_adjacency(edge_index, num_nodes)
    h_ref = jnp.maximum(a_hat @ (x @ params["w1"]) + params["b1"], 0.0)
    out_ref = a_hat @ (h_ref @ params["w2"]) + params["b2"]

    # Exercise both paths: fused (1-TC chips) and un-fused (v7x, 2 TCs).
    for fused in (True, False):
        out = gcn_forward(x, graph, params, fused=fused)
        jax.block_until_ready(out)
        assert out.shape == (num_nodes, out_channels)
        assert jnp.allclose(out, out_ref, atol=5e-2, rtol=5e-2), (
            fused, float(jnp.max(jnp.abs(out - out_ref))))

    print("KERNEL_OK")
</pallas_src>

<mosaic_0001>
module attributes {stable_mosaic.version = 11 : i64} {
  func.func @_fused_gcn_kernel(%arg0: i32, %arg1: i32, %arg2: i32, %arg3: memref<128x128xi8, #tpu.memory_space<vmem>>, %arg4: memref<128x128xbf16, #tpu.memory_space<vmem>>, %arg5: memref<128x128xbf16, #tpu.memory_space<vmem>>, %arg6: memref<128x128xbf16, #tpu.memory_space<vmem>>, %arg7: memref<1x128xf32, #tpu.memory_space<vmem>>, %arg8: memref<1x128xf32, #tpu.memory_space<vmem>>, %arg9: memref<128x1xf32, #tpu.memory_space<vmem>>, %arg10: memref<128x128xf32, #tpu.memory_space<vmem>>, %arg11: memref<128x128xbf16, #tpu.memory_space<vmem>>, %arg12: memref<128x128xf32, #tpu.memory_space<vmem>>) attributes {dimension_semantics = [#tpu.dimension_semantics<arbitrary>, #tpu.dimension_semantics<arbitrary>, #tpu.dimension_semantics<arbitrary>], iteration_bounds = array<i64: 2, 1, 1>, scalar_prefetch = 0 : i64, scratch_operands = 2 : i64, tpu.core_type = #tpu.core_type<tc>, window_params = [{transform_indices = @transform_0, window_bounds = array<i64: 128, 128>}, {transform_indices = @transform_1, window_bounds = array<i64: 128, 128>}, {pipeline_mode = #tpu.pipeline_mode<synchronous>, transform_indices = @transform_2, window_bounds = array<i64: 128, 128>}, {pipeline_mode = #tpu.pipeline_mode<synchronous>, transform_indices = @transform_3, window_bounds = array<i64: 128, 128>}, {pipeline_mode = #tpu.pipeline_mode<synchronous>, transform_indices = @transform_4, window_bounds = array<i64: 1, 128>}, {pipeline_mode = #tpu.pipeline_mode<synchronous>, transform_indices = @transform_5, window_bounds = array<i64: 1, 128>}, {transform_indices = @transform_6, window_bounds = array<i64: 128, 1>}, {transform_indices = @transform_7, window_bounds = array<i64: 128, 128>}]} {
    %c0_i32 = arith.constant 0 : i32
    %0 = arith.cmpi eq, %arg2, %c0_i32 : i32
    %1 = arith.extui %0 : i1 to i32
    %c0_i32_0 = arith.constant 0 : i32
    %2 = arith.cmpi ne, %1, %c0_i32_0 : i32
    scf.if %2 {
      %cst = arith.constant 0.000000e+00 : f32
      %14 = vector.broadcast %cst : f32 to vector<128x128xf32>
      %c0_7 = arith.constant 0 : index
      %c0_8 = arith.constant 0 : index
      %15 = vector.load %arg12[%c0_7, %c0_8] : memref<128x128xf32, #tpu.memory_space<vmem>>, vector<128x128xf32>
      tpu.vector_store %arg12[%c0_7, %c0_8], %14 {strides = array<i32>} : memref<128x128xf32, #tpu.memory_space<vmem>>, vector<128x128xf32>,
    } else {
    }
    %c0 = arith.constant 0 : index
    %c0_1 = arith.constant 0 : index
    %3 = vector.load %arg3[%c0, %c0_1] : memref<128x128xi8, #tpu.memory_space<vmem>>, vector<128x128xi8>
    %4 = arith.sitofp %3 : vector<128x128xi8> to vector<128x128xbf16>
    %c0_i32_2 = arith.constant 0 : i32
    %5 = arith.cmpi eq, %arg0, %c0_i32_2 : i32
    %6 = arith.extui %5 : i1 to i32
    %c0_i32_3 = arith.constant 0 : i32
    %7 = arith.cmpi ne, %6, %c0_i32_3 : i32
    scf.if %7 {
      %c0_7 = arith.constant 0 : index
      %c0_8 = arith.constant 0 : index
      %14 = vector.load %arg12[%c0_7, %c0_8] : memref<128x128xf32, #tpu.memory_space<vmem>>, vector<128x128xf32>
      %c0_9 = arith.constant 0 : index
      %c0_10 = arith.constant 0 : index
      %15 = vector.load %arg4[%c0_9, %c0_10] : memref<128x128xbf16, #tpu.memory_space<vmem>>, vector<128x128xbf16>
      %cst = arith.constant dense<0.000000e+00> : vector<128x128xf32>
      %16 = tpu.matmul %4, %15, %cst {dimension_numbers = #tpu.dot_dimension_numbers<[1], [0], [0], [1], [0, 0, 1, 1], [], []>} : vector<128x128xbf16>, vector<128x128xbf16>, vector<128x128xf32> -> vector<128x128xf32>
      %17 = arith.addf %14, %16 : vector<128x128xf32>
      %c0_11 = arith.constant 0 : index
      %c0_12 = arith.constant 0 : index
      %18 = vector.load %arg12[%c0_11, %c0_12] : memref<128x128xf32, #tpu.memory_space<vmem>>, vector<128x128xf32>
      tpu.vector_store %arg12[%c0_11, %c0_12], %17 {strides = array<i32>} : memref<128x128xf32, #tpu.memory_space<vmem>>, vector<128x128xf32>,
    } else {
    }
    %c1_i32 = arith.constant 1 : i32
    %8 = arith.cmpi eq, %arg0, %c1_i32 : i32
    %9 = arith.extui %8 : i1 to i32
    %c0_i32_4 = arith.constant 0 : i32
    %10 = arith.cmpi ne, %9, %c0_i32_4 : i32
    scf.if %10 {
      %c128_i32 = arith.constant 128 : i32
      %14 = arith.muli %arg2, %c128_i32 : i32
      %15 = tpu.assume_multiple %14, 128 : i32
      %c0_7 = arith.constant 0 : index
      %c0_8 = arith.constant 0 : index
      %16 = vector.load %arg12[%c0_7, %c0_8] : memref<128x128xf32, #tpu.memory_space<vmem>>, vector<128x128xf32>
      %17 = arith.index_cast %15 : i32 to index
      %c0_9 = arith.constant 0 : index
      %18 = vector.load %arg11[%17, %c0_9] : memref<128x128xbf16, #tpu.memory_space<vmem>>, vector<128x128xbf16>
      %cst = arith.constant dense<0.000000e+00> : vector<128x128xf32>
      %19 = tpu.matmul %4, %18, %cst {dimension_numbers = #tpu.dot_dimension_numbers<[1], [0], [0], [1], [0, 0, 1, 1], [], []>} : vector<128x128xbf16>, vector<128x128xbf16>, vector<128x128xf32> -> vector<128x128xf32>
      %20 = arith.addf %16, %19 : vector<128x128xf32>
      %c0_10 = arith.constant 0 : index
      %c0_11 = arith.constant 0 : index
      %21 = vector.load %arg12[%c0_10, %c0_11] : memref<128x128xf32, #tpu.memory_space<vmem>>, vector<128x128xf32>
      tpu.vector_store %arg12[%c0_10, %c0_11], %20 {strides = array<i32>} : memref<128x128xf32, #tpu.memory_space<vmem>>, vector<128x128xf32>,
    } else {
    }
    %c0_i32_5 = arith.constant 0 : i32
    %11 = arith.cmpi eq, %arg2, %c0_i32_5 : i32
    %12 = arith.extui %11 : i1 to i32
    %c0_i32_6 = arith.constant 0 : i32
    %13 = arith.cmpi ne, %12, %c0_i32_6 : i32
    scf.if %13 {
      %c0_7 = arith.constant 0 : index
      %c0_8 = arith.constant 0 : index
      %14 = vector.load %arg9[%c0_7, %c0_8] : memref<128x1xf32, #tpu.memory_space<vmem>>, vector<128x1xf32>
      %c0_9 = arith.constant 0 : index
      %c0_10 = arith.constant 0 : index
      %15 = vector.load %arg12[%c0_9, %c0_10] : memref<128x128xf32, #tpu.memory_space<vmem>>, vector<128x128xf32>
      %16 = vector.broadcast %14 : vector<128x1xf32> to vector<128x128xf32>
      %17 = arith.mulf %16, %15 : vector<128x128xf32>
      %18 = arith.truncf %17 : vector<128x128xf32> to vector<128x128xbf16>
      %c128_i32 = arith.constant 128 : i32
      %19 = arith.muli %arg1, %c128_i32 : i32
      %20 = tpu.assume_multiple %19, 128 : i32
      %c0_i32_11 = arith.constant 0 : i32
      %21 = arith.cmpi eq, %arg0, %c0_i32_11 : i32
      %22 = arith.extui %21 : i1 to i32
      %c0_i32_12 = arith.constant 0 : i32
      %23 = arith.cmpi ne, %22, %c0_i32_12 : i32
      scf.if %23 {
        %c0_15 = arith.constant 0 : index
        %c0_16 = arith.constant 0 : index
        %27 = vector.load %arg5[%c0_15, %c0_16] : memref<128x128xbf16, #tpu.memory_space<vmem>>, vector<128x128xbf16>
        %cst = arith.constant dense<0.000000e+00> : vector<128x128xf32>
        %28 = tpu.matmul %18, %27, %cst {dimension_numbers = #tpu.dot_dimension_numbers<[1], [0], [0], [1], [0, 0, 1, 1], [], []>} : vector<128x128xbf16>, vector<128x128xbf16>, vector<128x128xf32> -> vector<128x128xf32>
        %c0_17 = arith.constant 0 : index
        %c0_18 = arith.constant 0 : index
        %29 = vector.load %arg7[%c0_17, %c0_18] : memref<1x128xf32, #tpu.memory_space<vmem>>, vector<1x128xf32>
        %30 = vector.broadcast %29 : vector<1x128xf32> to vector<128x128xf32>
        %31 = arith.addf %28, %30 : vector<128x128xf32>
        %cst_19 = arith.constant 0.000000e+00 : f32
        %32 = vector.broadcast %cst_19 : f32 to vector<128x128xf32>
        %33 = arith.maximumf %31, %32 : vector<128x128xf32>
        %34 = vector.broadcast %14 : vector<128x1xf32> to vector<128x128xf32>
        %35 = arith.mulf %34, %33 : vector<128x128xf32>
        %36 = arith.truncf %35 : vector<128x128xf32> to vector<128x128xbf16>
        %37 = arith.index_cast %20 : i32 to index
        %c0_20 = arith.constant 0 : index
        %38 = vector.load %arg11[%37, %c0_20] : memref<128x128xbf16, #tpu.memory_space<vmem>>, vector<128x128xbf16>
        tpu.vector_store %arg11[%37, %c0_20], %36 {strides = array<i32>} : memref<128x128xbf16, #tpu.memory_space<vmem>>, vector<128x128xbf16>,
      } else {
      }
      %c1_i32_13 = arith.constant 1 : i32
      %24 = arith.cmpi eq, %arg0, %c1_i32_13 : i32
      %25 = arith.extui %24 : i1 to i32
      %c0_i32_14 = arith.constant 0 : i32
      %26 = arith.cmpi ne, %25, %c0_i32_14 : i32
      scf.if %26 {
        %c0_15 = arith.constant 0 : index
        %c0_16 = arith.constant 0 : index
        %27 = vector.load %arg6[%c0_15, %c0_16] : memref<128x128xbf16, #tpu.memory_space<vmem>>, vector<128x128xbf16>
        %cst = arith.constant dense<0.000000e+00> : vector<128x128xf32>
        %28 = tpu.matmul %18, %27, %cst {dimension_numbers = #tpu.dot_dimension_numbers<[1], [0], [0], [1], [0, 0, 1, 1], [], []>} : vector<128x128xbf16>, vector<128x128xbf16>, vector<128x128xf32> -> vector<128x128xf32>
        %c0_17 = arith.constant 0 : index
        %c0_18 = arith.constant 0 : index
        %29 = vector.load %arg8[%c0_17, %c0_18] : memref<1x128xf32, #tpu.memory_space<vmem>>, vector<1x128xf32>
        %30 = vector.broadcast %29 : vector<1x128xf32> to vector<128x128xf32>
        %31 = arith.addf %28, %30 : vector<128x128xf32>
        %c0_19 = arith.constant 0 : index
        %c0_20 = arith.constant 0 : index
        %32 = vector.load %arg10[%c0_19, %c0_20] : memref<128x128xf32, #tpu.memory_space<vmem>>, vector<128x128xf32>
        tpu.vector_store %arg10[%c0_19, %c0_20], %31 {strides = array<i32>} : memref<128x128xf32, #tpu.memory_space<vmem>>, vector<128x128xf32>,
      } else {
      }
    } else {
    }
    return
  }
  func.func @transform_0(%arg0: i32, %arg1: i32, %arg2: i32) -> (i32, i32) {
    %c0_i32 = arith.constant 0 : i32
    return %arg1, %arg2 : i32, i32
  }
  func.func @transform_1(%arg0: i32, %arg1: i32, %arg2: i32) -> (i32, i32) {
    %c1_i32 = arith.constant 1 : i32
    %0 = arith.subi %c1_i32, %arg0 : i32
    %1 = arith.muli %0, %arg2 : i32
    %c0_i32 = arith.constant 0 : i32
    %c0_i32_0 = arith.constant 0 : i32
    return %1, %c0_i32 : i32, i32
  }
  func.func @transform_2(%arg0: i32, %arg1: i32, %arg2: i32) -> (i32, i32) {
    %c0_i32 = arith.constant 0 : i32
    %c0_i32_0 = arith.constant 0 : i32
    %c0_i32_1 = arith.constant 0 : i32
    return %c0_i32, %c0_i32_0 : i32, i32
  }
  func.func @transform_3(%arg0: i32, %arg1: i32, %arg2: i32) -> (i32, i32) {
    %c0_i32 = arith.constant 0 : i32
    %c0_i32_0 = arith.constant 0 : i32
    %c0_i32_1 = arith.constant 0 : i32
    return %c0_i32, %c0_i32_0 : i32, i32
  }
  func.func @transform_4(%arg0: i32, %arg1: i32, %arg2: i32) -> (i32, i32) {
    %c0_i32 = arith.constant 0 : i32
    %c0_i32_0 = arith.constant 0 : i32
    %c0_i32_1 = arith.constant 0 : i32
    return %c0_i32, %c0_i32_0 : i32, i32
  }
  func.func @transform_5(%arg0: i32, %arg1: i32, %arg2: i32) -> (i32, i32) {
    %c0_i32 = arith.constant 0 : i32
    %c0_i32_0 = arith.constant 0 : i32
    %c0_i32_1 = arith.constant 0 : i32
    return %c0_i32, %c0_i32_0 : i32, i32
  }
  func.func @transform_6(%arg0: i32, %arg1: i32, %arg2: i32) -> (i32, i32) {
    %c0_i32 = arith.constant 0 : i32
    %c0_i32_0 = arith.constant 0 : i32
    return %arg1, %c0_i32 : i32, i32
  }
  func.func @transform_7(%arg0: i32, %arg1: i32, %arg2: i32) -> (i32, i32) {
    %0 = arith.muli %arg0, %arg1 : i32
    %c0_i32 = arith.constant 0 : i32
    %c0_i32_0 = arith.constant 0 : i32
    return %0, %c0_i32 : i32, i32
  }
}

</mosaic_0001>

<llo_original>
// kernel: tpu_custom_call.1
$region0: #{tpu_custom_call.1}
  #allocation0 [shape = 'u32[]', space=smem, size = 0x4, offset = 0x4, fixed_abs, tag = 'smem constant byte address 0x4 - core index']
  #allocation1 [shape = 'u32[72,128]{1,0:T(1,128)}', space=vmem, size = 0x9000, scoped, tag = 'internal scratch']
  #allocation2 [shape = 'bf16[128,128]{1,0:T(8,128)(2,1)}', space=vmem, size = 0x8000, scoped, tag = 'scratch operand']
  #allocation3 [shape = 'f32[128,128]{1,0:T(8,128)}', space=vmem, size = 0x10000, scoped, tag = 'scratch operand']
  %s0 = inlined_call_operand.hbm [shape: s8[128,128], index: 0, kind: input, shape index: {}]
  %s1 = inlined_call_operand.vmem [shape: bf16[128,128], index: 1, kind: input, shape index: {}]
  %s2 = inlined_call_operand.vmem [shape: bf16[128,128], index: 2, kind: input, shape index: {}]
  %s3 = inlined_call_operand.hbm [shape: bf16[128,128], index: 3, kind: input, shape index: {}]
  %s4 = inlined_call_operand.vmem [shape: f32[1,128], index: 4, kind: input, shape index: {}]
  %s5 = inlined_call_operand.vmem [shape: f32[1,128], index: 5, kind: input, shape index: {}]
  %s6 = inlined_call_operand.vmem [shape: f32[128,1], index: 6, kind: input, shape index: {}]
  %s7 = inlined_call_operand.hbm [shape: f32[128,128], index: 7, kind: output, shape index: {}]
  %s8 = sld [smem:[#allocation0]]
  $region93: #{tpu_custom_call.1} parent=0
    _
  %s10 = ssub.s32 1, %s8
  %s11 = scalar_select 0, %s10, %s8
  $region1: #{tpu_custom_call.1} parent=0
    #allocation4 [shape = 'u8[16384]{0}', space=vmem, size = 0x4000, scoped, tag = 'input window, operand 0, single buffered']
    #allocation5 [shape = 's32[2]{0}', space=sflag, size = 0x8, scoped, tag = 'scoped memory for tpu_custom_call.1']
    #allocation6 [shape = 's32[2]{0}', space=sflag, size = 0x8, scoped, tag = 'scoped memory for tpu_custom_call.1']
    #allocation7 [shape = 'u8[32768]{0}', space=vmem, size = 0x8000, scoped, tag = 'input window, operand 3, single buffered']
    #allocation8 [shape = 's32[1]{0}', space=sflag, size = 0x4, scoped, tag = 'scoped memory for tpu_custom_call.1']
    #allocation9 [shape = 'u8[131072]{0}', space=vmem, size = 0x20000, scoped, tag = 'output window, operand 0']
    %12 = vsyncpa [#allocation5], 0
    %13 = vsyncpa [#allocation8], 0
    %14 = vsyncpa [#allocation6], 0
    %s15 = scalar_lea.sflag [#allocation6], 1
    %16 = vsyncpa %s15, 0
    loop: start=0, step=1, limit=4
    $region2: #{tpu_custom_call.1} parent=1 // loop_pre_header
      _
    $region3: #{tpu_custom_call.1} parent=1 // loop_header
      %s18 = sphi 0, %s22
      %p19 = scmp.ge.s32.totalorder %s18, 4
      %s25 = sphi 0, %s44
      %s26 = sphi 0, %s40
      %s27 = sphi 0, %s36
      %s28 = sphi 0, %s25
      %s29 = sphi 0, %s26
      %s30 = sphi 0, %s27
      %s31 = sphi 0, %s28
      %s32 = sphi 0, %s29
      %s33 = sphi 0, %s30
      %s49 = sphi 0, %s51
      %s52 = sphi 0, %s49
      %s53 = sphi 0, %s52
      %s69 = sphi 0, %s53
      %s79 = sphi 0, %s81
      %s82 = sphi 0, %s79
      %s83 = sphi 0, %s82
      %s99 = sphi 0, %s83
      %s103 = sphi 0, %s103
      %s105 = sphi 0, %s103
      %s106 = sphi 0, %s105
      %s120 = sphi 0, %s106
      %s124 = sphi 0, %s124
      %s126 = sphi 0, %s124
      %s127 = sphi 0, %s126
      %s141 = sphi 0, %s127
      %s145 = sphi 0, %s145
      %s147 = sphi 0, %s145
      %s148 = sphi 0, %s147
      %s162 = sphi 0, %s148
      %s166 = sphi 0, %s166
      %s168 = sphi 0, %s166
      %s169 = sphi 0, %s168
      %s183 = sphi 0, %s169
      %s189 = sphi 0, %s191
      %s192 = sphi 0, %s189
      %s193 = sphi 0, %s192
      %s209 = sphi 0, %s193
      %s217 = sphi 0, %s219
      %s220 = sphi 0, %s217
      %s221 = sphi 0, %s220
      %s237 = sphi 0, %s221
    $region4: #{tpu_custom_call.1} parent=1 // loop_header_branch
      %21 = sbr.rel (%p19) target = $region8
    $region5: #{tpu_custom_call.1} parent=1 // loop_body
      %s23 = ssub.s32 %s18, 1
      %s24 = ssub.s32 %s18, 2
      %s34 = sadd.s32 1, %s27
      %p35 = scmp.ge.s32.totalorder %s34, 1
      %s36 = scalar_select %p35, 0, %s34
      %s37 = sadd.s32 1, %s26
      %s38 = scalar_select %p35, %s37, %s26
      %p39 = scmp.ge.s32.totalorder %s38, 1
      %s40 = scalar_select %p39, 0, %s38
      %s41 = sadd.s32 1, %s25
      %s42 = scalar_select %p39, %s41, %s25
      %p43 = scmp.ge.s32.totalorder %s42, 2
      %s44 = scalar_select %p43, 0, %s42
      %s45 = ssub.s32 %s26, %s40
      %s46 = ssub.s32 %s27, %s36
      %s47 = sor.u32 %s45, %s46
      %p48 = scmp.eq.s32.totalorder %s47, 0
      %s50 = sadd.s32 %s49, 1
      %s51 = scalar_select %p48, %s49, %s50
      %p54 = pneg %p48
      %p55 = scmp.eq.s32.totalorder %s18, 1
      %p56 = por %p54, %p55
      %p57 = scmp.ne.s32.totalorder %s49, %s52
      %p58 = scmp.eq.s32.totalorder %s18, 0
      %p59 = por %p57, %p58
      %p60 = scmp.ne.s32.totalorder %s49, %s52
      %p61 = scmp.eq.s32.totalorder %s23, 1
      %p62 = por %p60, %p61
      %p63 = scmp.ne.s32.totalorder %s52, %s53
      %p64 = scmp.eq.s32.totalorder %s23, 0
      %p65 = por %p63, %p64
      %p66 = scmp.ne.s32.totalorder %s52, %s53
      %p67 = scmp.eq.s32.totalorder %s24, 1
      %p68 = por %p66, %p67
      %p70 = scmp.ne.s32.totalorder %s53, %s69
      %p71 = scmp.eq.s32.totalorder %s24, 0
      %p72 = por %p70, %p71
      %s73 = ssub.s32 1, %s25
      %s74 = smul.u32 %s73, %s27
      %s75 = ssub.s32 1, %s44
      %s76 = smul.u32 %s75, %s36
      %s77 = ssub.s32 %s74, %s76
      %p78 = scmp.eq.s32.totalorder %s77, 0
      %s80 = sadd.s32 %s79, 1
      %s81 = scalar_select %p78, %s79, %s80
      %p84 = pneg %p78
      %p85 = scmp.eq.s32.totalorder %s18, 1
      %p86 = por %p84, %p85
      %p87 = scmp.ne.s32.totalorder %s79, %s82
      %p88 = scmp.eq.s32.totalorder %s18, 0
      %p89 = por %p87, %p88
      %p90 = scmp.ne.s32.totalorder %s79, %s82
      %p91 = scmp.eq.s32.totalorder %s23, 1
      %p92 = por %p90, %p91
      %p93 = scmp.ne.s32.totalorder %s82, %s83
      %p94 = scmp.eq.s32.totalorder %s23, 0
      %p95 = por %p93, %p94
      %p96 = scmp.ne.s32.totalorder %s82, %s83
      %p97 = scmp.eq.s32.totalorder %s24, 1
      %p98 = por %p96, %p97
      %p100 = scmp.ne.s32.totalorder %s83, %s99
      %p101 = scmp.eq.s32.totalorder %s24, 0
      %p102 = por %p100, %p101
      %s104 = sadd.s32 %s103, 1
      %p107 = scmp.eq.s32.totalorder %s18, 1
      %p108 = scmp.ne.s32.totalorder %s103, %s105
      %p109 = scmp.eq.s32.totalorder %s18, 0
      %p110 = por %p108, %p109
      %p111 = scmp.ne.s32.totalorder %s103, %s105
      %p112 = scmp.eq.s32.totalorder %s23, 1
      %p113 = por %p111, %p112
      %p114 = scmp.ne.s32.totalorder %s105, %s106
      %p115 = scmp.eq.s32.totalorder %s23, 0
      %p116 = por %p114, %p115
      %p117 = scmp.ne.s32.totalorder %s105, %s106
      %p118 = scmp.eq.s32.totalorder %s24, 1
      %p119 = por %p117, %p118
      %p121 = scmp.ne.s32.totalorder %s106, %s120
      %p122 = scmp.eq.s32.totalorder %s24, 0
      %p123 = por %p121, %p122
      %s125 = sadd.s32 %s124, 1
      %p128 = scmp.eq.s32.totalorder %s18, 1
      %p129 = scmp.ne.s32.totalorder %s124, %s126
      %p130 = scmp.eq.s32.totalorder %s18, 0
      %p131 = por %p129, %p130
      %p132 = scmp.ne.s32.totalorder %s124, %s126
      %p133 = scmp.eq.s32.totalorder %s23, 1
      %p134 = por %p132, %p133
      %p135 = scmp.ne.s32.totalorder %s126, %s127
      %p136 = scmp.eq.s32.totalorder %s23, 0
      %p137 = por %p135, %p136
      %p138 = scmp.ne.s32.totalorder %s126, %s127
      %p139 = scmp.eq.s32.totalorder %s24, 1
      %p140 = por %p138, %p139
      %p142 = scmp.ne.s32.totalorder %s127, %s141
      %p143 = scmp.eq.s32.totalorder %s24, 0
      %p144 = por %p142, %p143
      %s146 = sadd.s32 %s145, 1
      %p149 = scmp.eq.s32.totalorder %s18, 1
      %p150 = scmp.ne.s32.totalorder %s145, %s147
      %p151 = scmp.eq.s32.totalorder %s18, 0
      %p152 = por %p150, %p151
      %p153 = scmp.ne.s32.totalorder %s145, %s147
      %p154 = scmp.eq.s32.totalorder %s23, 1
      %p155 = por %p153, %p154
      %p156 = scmp.ne.s32.totalorder %s147, %s148
      %p157 = scmp.eq.s32.totalorder %s23, 0
      %p158 = por %p156, %p157
      %p159 = scmp.ne.s32.totalorder %s147, %s148
      %p160 = scmp.eq.s32.totalorder %s24, 1
      %p161 = por %p159, %p160
      %p163 = scmp.ne.s32.totalorder %s148, %s162
      %p164 = scmp.eq.s32.totalorder %s24, 0
      %p165 = por %p163, %p164
      %s167 = sadd.s32 %s166, 1
      %p170 = scmp.eq.s32.totalorder %s18, 1
      %p171 = scmp.ne.s32.totalorder %s166, %s168
      %p172 = scmp.eq.s32.totalorder %s18, 0
      %p173 = por %p171, %p172
      %p174 = scmp.ne.s32.totalorder %s166, %s168
      %p175 = scmp.eq.s32.totalorder %s23, 1
      %p176 = por %p174, %p175
      %p177 = scmp.ne.s32.totalorder %s168, %s169
      %p178 = scmp.eq.s32.totalorder %s23, 0
      %p179 = por %p177, %p178
      %p180 = scmp.ne.s32.totalorder %s168, %s169
      %p181 = scmp.eq.s32.totalorder %s24, 1
      %p182 = por %p180, %p181
      %p184 = scmp.ne.s32.totalorder %s169, %s183
      %p185 = scmp.eq.s32.totalorder %s24, 0
      %p186 = por %p184, %p185
      %s187 = ssub.s32 %s26, %s40
      %p188 = scmp.eq.s32.totalorder %s187, 0
      %s190 = sadd.s32 %s189, 1
      %s191 = scalar_select %p188, %s189, %s190
      %p194 = pneg %p188
      %p195 = scmp.eq.s32.totalorder %s18, 1
      %p196 = por %p194, %p195
      %p197 = scmp.ne.s32.totalorder %s189, %s192
      %p198 = scmp.eq.s32.totalorder %s18, 0
      %p199 = por %p197, %p198
      %p200 = scmp.ne.s32.totalorder %s189, %s192
      %p201 = scmp.eq.s32.totalorder %s23, 1
      %p202 = por %p200, %p201
      %p203 = scmp.ne.s32.totalorder %s192, %s193
      %p204 = scmp.eq.s32.totalorder %s23, 0
      %p205 = por %p203, %p204
      %p206 = scmp.ne.s32.totalorder %s192, %s193
      %p207 = scmp.eq.s32.totalorder %s24, 1
      %p208 = por %p206, %p207
      %p210 = scmp.ne.s32.totalorder %s193, %s209
      %p211 = scmp.eq.s32.totalorder %s24, 0
      %p212 = por %p210, %p211
      %s213 = smul.u32 %s25, %s26
      %s214 = smul.u32 %s44, %s40
      %s215 = ssub.s32 %s213, %s214
      %p216 = scmp.eq.s32.totalorder %s215, 0
      %s218 = sadd.s32 %s217, 1
      %s219 = scalar_select %p216, %s217, %s218
      %p222 = pneg %p216
      %p223 = scmp.eq.s32.totalorder %s18, 1
      %p224 = por %p222, %p223
      %p225 = scmp.ne.s32.totalorder %s217, %s220
      %p226 = scmp.eq.s32.totalorder %s18, 0
      %p227 = por %p225, %p226
      %p228 = scmp.ne.s32.totalorder %s217, %s220
      %p229 = scmp.eq.s32.totalorder %s23, 1
      %p230 = por %p228, %p229
      %p231 = scmp.ne.s32.totalorder %s220, %s221
      %p232 = scmp.eq.s32.totalorder %s23, 0
      %p233 = por %p231, %p232
      %p234 = scmp.ne.s32.totalorder %s220, %s221
      %p235 = scmp.eq.s32.totalorder %s24, 1
      %p236 = por %p234, %p235
      %p238 = scmp.ne.s32.totalorder %s221, %s237
      %p239 = scmp.eq.s32.totalorder %s24, 0
      %p240 = por %p238, %p239
      %p241 = scmp.le.s32.totalorder 1, %s18
      %p242 = scmp.lt.s32.totalorder %s18, 3
      %p243 = pnand %p241, %p242
      %p244 = pneg %p243
      // Predicated region
      $region9: #{tpu_custom_call.1} parent=5 // pred_check
        _
      $region10: #{tpu_custom_call.1} parent=5 // pred_check_branch
        %246 = sbr.rel (%p243) target = $region12
      $region11: #{tpu_custom_call.1} parent=5 // pred_region
        %s247 = ssub.s32 %s18, 1
        // Predicated region
        $region13: #{tpu_custom_call.1} parent=11 // pred_check
          %p248 = pneg %p65
        $region14: #{tpu_custom_call.1} parent=11 // pred_check_branch
          %250 = sbr.rel (%p248) target = $region16
        $region15: #{tpu_custom_call.1} parent=11 // pred_region
          %s251 = smul.u32 4, %s29
          %253 = vsyncadd [#allocation5], 0
          %s254 = sadd.s32 %s30, %s251
          %s255 = smul.addr %s254, 8
          %s256 = scalar_lea.hbm %s0, %s255
          %s257 = sshll.u32 %s256, 4
          %s258 = int_to_ptr.hbm [resolvable:$true] %s257
          %s259 = sshll.u32 [#allocation4], 4
          %s260 = int_to_ptr.vmem [resolvable:$true] %s259
          %265 = dma.hbm_to_vmem [thread:$0]  %s258, 512, %s260, [#allocation5], 128, 128, 8
        $region16: #{tpu_custom_call.1} parent=11 // pred_fallthru
          _
        // Predicated region
        $region17: #{tpu_custom_call.1} parent=11 // pred_check
          %p266 = pneg %p116
        $region18: #{tpu_custom_call.1} parent=11 // pred_check_branch
          %268 = sbr.rel (%p266) target = $region20
        $region19: #{tpu_custom_call.1} parent=11 // pred_region
          _
        $region20: #{tpu_custom_call.1} parent=11 // pred_fallthru
          _
        // Predicated region
        $region21: #{tpu_custom_call.1} parent=11 // pred_check
          %p269 = pneg %p137
        $region22: #{tpu_custom_call.1} parent=11 // pred_check_branch
          %271 = sbr.rel (%p269) target = $region24
        $region23: #{tpu_custom_call.1} parent=11 // pred_region
          %273 = vsyncadd [#allocation8], 0
          %s274 = sshll.u32 %s3, 4
          %s275 = int_to_ptr.hbm [resolvable:$true] %s274
          %s276 = sshll.u32 [#allocation7], 4
          %s277 = int_to_ptr.vmem [resolvable:$true] %s276
          %282 = dma.hbm_to_vmem [thread:$0]  %s275, 1024, %s277, [#allocation8], 64, 64, 4
        $region24: #{tpu_custom_call.1} parent=11 // pred_fallthru
          _
        // Predicated region
        $region25: #{tpu_custom_call.1} parent=11 // pred_check
          %p283 = pneg %p158
        $region26: #{tpu_custom_call.1} parent=11 // pred_check_branch
          %285 = sbr.rel (%p283) target = $region28
        $region27: #{tpu_custom_call.1} parent=11 // pred_region
          _
        $region28: #{tpu_custom_call.1} parent=11 // pred_fallthru
          _
        // Predicated region
        $region29: #{tpu_custom_call.1} parent=11 // pred_check
          %p286 = pneg %p179
        $region30: #{tpu_custom_call.1} parent=11 // pred_check_branch
          %288 = sbr.rel (%p286) target = $region32
        $region31: #{tpu_custom_call.1} parent=11 // pred_region
          _
        $region32: #{tpu_custom_call.1} parent=11 // pred_fallthru
          _
        // Predicated region
        $region33: #{tpu_custom_call.1} parent=11 // pred_check
          %p289 = pneg %p205
        $region34: #{tpu_custom_call.1} parent=11 // pred_check_branch
          %291 = sbr.rel (%p289) target = $region36
        $region35: #{tpu_custom_call.1} parent=11 // pred_region
          %s292 = smul.u32 16, %s29
          %p293 = scmp.lt.s32.totalorder %s292, 15
          %s294 = scalar_select %p293, %s292, 15
          %s295 = smul.addr %s294, 8
          %s296 = scalar_lea.vmem %s6, %s295
          %s297 = smul.u32 16, %s29
        $region36: #{tpu_custom_call.1} parent=11 // pred_fallthru
          _
      $region12: #{tpu_custom_call.1} parent=5 // pred_fallthru
        _
      %p298 = scmp.lt.s32.totalorder %s18, 2
      // Predicated region
      $region37: #{tpu_custom_call.1} parent=5 // pred_check
        %p299 = pneg %p298
      $region38: #{tpu_custom_call.1} parent=5 // pred_check_branch
        %301 = sbr.rel (%p299) target = $region40
      $region39: #{tpu_custom_call.1} parent=5 // pred_region
        // Predicated region
        $region41: #{tpu_custom_call.1} parent=39 // pred_check
          %p302 = pneg %p89
        $region42: #{tpu_custom_call.1} parent=39 // pred_check_branch
          %304 = sbr.rel (%p302) target = $region44
        $region43: #{tpu_custom_call.1} parent=39 // pred_region
          %s305 = ssub.s32 1, %s25
          %s306 = smul.u32 %s305, %s27
          %s307 = smul.u32 16, %s306
          %p308 = scmp.lt.s32.totalorder %s307, 15
          %s309 = scalar_select %p308, %s307, 15
          %s310 = smul.addr %s309, 4
          %s311 = scalar_lea.vmem %s1, %s310
          %s312 = ssub.s32 1, %s25
          %s313 = smul.u32 %s312, %s27
          %s314 = smul.u32 16, %s313
        $region44: #{tpu_custom_call.1} parent=39 // pred_fallthru
          _
      $region40: #{tpu_custom_call.1} parent=5 // pred_fallthru
        _
      %p315 = scmp.le.s32.totalorder 1, %s18
      %p316 = scmp.lt.s32.totalorder %s18, 3
      %p317 = pnand %p315, %p316
      %p318 = pneg %p317
      // Predicated region
      $region45: #{tpu_custom_call.1} parent=5 // pred_check
        _
      $region46: #{tpu_custom_call.1} parent=5 // pred_check_branch
        %320 = sbr.rel (%p317) target = $region48
      $region47: #{tpu_custom_call.1} parent=5 // pred_region
        %s321 = ssub.s32 %s18, 1
        // Predicated region
        $region49: #{tpu_custom_call.1} parent=47 // pred_check
          %p322 = pneg %p65
        $region50: #{tpu_custom_call.1} parent=47 // pred_check_branch
          %324 = sbr.rel (%p322) target = $region52
        $region51: #{tpu_custom_call.1} parent=47 // pred_region
          %326 = dma.done [#allocation5], 512
        $region52: #{tpu_custom_call.1} parent=47 // pred_fallthru
          _
        // Predicated region
        $region53: #{tpu_custom_call.1} parent=47 // pred_check
          %p327 = pneg %p137
        $region54: #{tpu_custom_call.1} parent=47 // pred_check_branch
          %329 = sbr.rel (%p327) target = $region56
        $region55: #{tpu_custom_call.1} parent=47 // pred_region
          %331 = dma.done [#allocation8], 1024
        $region56: #{tpu_custom_call.1} parent=47 // pred_fallthru
          _
        %p332 = pneg %p65
        %p333 = pneg %p62
        %s334 = ssub.s32 1, %s28
        %s335 = smul.u32 %s334, %s30
        %s336 = smul.u32 16, %s335
        %p337 = scmp.lt.s32.totalorder %s336, 15
        %s338 = scalar_select %p337, %s336, 15
        %s339 = smul.addr %s338, 4
        %s340 = scalar_lea.vmem %s1, %s339
        %p341 = pneg %p95
        %p342 = pneg %p92
        %p343 = pneg %p116
        %p344 = pneg %p113
        %p345 = pneg %p137
        %p346 = pneg %p134
        %p347 = pneg %p158
        %p348 = pneg %p155
        %p349 = pneg %p179
        %p350 = pneg %p176
        %s351 = smul.u32 16, %s29
        %p352 = scmp.lt.s32.totalorder %s351, 15
        %s353 = scalar_select %p352, %s351, 15
        %s354 = smul.addr %s353, 8
        %s355 = scalar_lea.vmem %s6, %s354
        %p356 = pneg %p205
        %p357 = pneg %p202
        %p358 = pneg %p233
        %p359 = pneg %p230
        %s360 = sand.u32 %s220, 1
        %s361 = scalar_lea.sflag [#allocation6], %s360
        %s362 = sand.u32 %s220, 1
        %s363 = smul.addr %s362, 128
        %s364 = scalar_lea.vmem [#allocation9], %s363
        %s365 = smul.u32 4, %s29
        %s366 = ssub.s32 1, %s28
        %s367 = smul.u32 %s366, %s30
        %s368 = smul.u32 16, %s367
        %p369 = scmp.lt.s32.totalorder %s368, 15
        %s370 = scalar_select %p369, %s368, 15
        %s371 = smul.addr %s370, 4
        %s372 = scalar_lea.vmem %s1, %s371
        %s373 = ssub.s32 1, %s28
        %s374 = smul.u32 %s373, %s30
        %s375 = smul.u32 16, %s374
        %s376 = smul.u32 16, %s29
        %p377 = scmp.lt.s32.totalorder %s376, 15
        %s378 = scalar_select %p377, %s376, 15
        %s379 = smul.addr %s378, 8
        %s380 = scalar_lea.vmem %s6, %s379
        %s381 = smul.u32 16, %s29
        %s382 = smul.u32 %s28, %s29
        %s383 = smul.u32 16, %s382
        %p384 = scmp.eq.s32.totalorder %s30, 0
        // Predicated region
        $region57: #{tpu_custom_call.1} parent=47 // pred_check
          %p385 = pneg %p384
        $region58: #{tpu_custom_call.1} parent=47 // pred_check_branch
          %387 = sbr.rel (%p385) target = $region60
        $region59: #{tpu_custom_call.1} parent=47 // pred_region
          %388 = vst [vmem:[#allocation3] sm:$0xff] 0.0
          %389 = vst [vmem:[#allocation3 + $0x8] sm:$0xff] 0.0
          %390 = vst [vmem:[#allocation3 + $0x10] sm:$0xff] 0.0
          %391 = vst [vmem:[#allocation3 + $0x18] sm:$0xff] 0.0
          %392 = vst [vmem:[#allocation3 + $0x20] sm:$0xff] 0.0
          %393 = vst [vmem:[#allocation3 + $0x28] sm:$0xff] 0.0
          %394 = vst [vmem:[#allocation3 + $0x30] sm:$0xff] 0.0
          %395 = vst [vmem:[#allocation3 + $0x38] sm:$0xff] 0.0
          %396 = vst [vmem:[#allocation3 + $0x40] sm:$0xff] 0.0
          %397 = vst [vmem:[#allocation3 + $0x48] sm:$0xff] 0.0
          %398 = vst [vmem:[#allocation3 + $0x50] sm:$0xff] 0.0
          %399 = vst [vmem:[#allocation3 + $0x58] sm:$0xff] 0.0
          %400 = vst [vmem:[#allocation3 + $0x60] sm:$0xff] 0.0
          %401 = vst [vmem:[#allocation3 + $0x68] sm:$0xff] 0.0
          %402 = vst [vmem:[#allocation3 + $0x70] sm:$0xff] 0.0
          %403 = vst [vmem:[#allocation3 + $0x78] sm:$0xff] 0.0
        $region60: #{tpu_custom_call.1} parent=47 // pred_fallthru
          _
        %v404 = vld [vmem:[#allocation4] sm:$0xff]
        %v405 = vld [vmem:[#allocation4 + $0x8] sm:$0xff]
        %v406 = vld [vmem:[#allocation4 + $0x10] sm:$0xff]
        %v407 = vld [vmem:[#allocation4 + $0x18] sm:$0xff]
        %v408 = vunpack.c.0.s8 %v404
        %v409 = vunpack.c.1.s8 %v404
        %v410 = vunpack.c.2.s8 %v404
        %v411 = vunpack.c.3.s8 %v404
        %v412 = vunpack.c.0.s8 %v405
        %v413 = vunpack.c.1.s8 %v405
        %v414 = vunpack.c.2.s8 %v405
        %v415 = vunpack.c.3.s8 %v405
        %v416 = vunpack.c.0.s8 %v406
        %v417 = vunpack.c.1.s8 %v406
        %v418 = vunpack.c.2.s8 %v406
        %v419 = vunpack.c.3.s8 %v406
        %v420 = vunpack.c.0.s8 %v407
        %v421 = vunpack.c.1.s8 %v407
        %v422 = vunpack.c.2.s8 %v407
        %v423 = vunpack.c.3.s8 %v407
        %v424 = vcvt.s32.f32 %v408
        %v425 = vcvt.s32.f32 %v409
        %v426 = vcvt.s32.f32 %v410
        %v427 = vcvt.s32.f32 %v411
        %v428 = vcvt.s32.f32 %v412
        %v429 = vcvt.s32.f32 %v413
        %v430 = vcvt.s32.f32 %v414
        %v431 = vcvt.s32.f32 %v415
        %v432 = vcvt.s32.f32 %v416
        %v433 = vcvt.s32.f32 %v417
        %v434 = vcvt.s32.f32 %v418
        %v435 = vcvt.s32.f32 %v419
        %v436 = vcvt.s32.f32 %v420
        %v437 = vcvt.s32.f32 %v421
        %v438 = vcvt.s32.f32 %v422
        %v439 = vcvt.s32.f32 %v423
        %v440 = vpack.c.bf16 %v425, %v424
        %v441 = vpack.c.bf16 %v427, %v426
        %v442 = vpack.c.bf16 %v429, %v428
        %v443 = vpack.c.bf16 %v431, %v430
        %v444 = vpack.c.bf16 %v433, %v432
        %v445 = vpack.c.bf16 %v435, %v434
        %v446 = vpack.c.bf16 %v437, %v436
        %v447 = vpack.c.bf16 %v439, %v438
        %p448 = scmp.eq.s32.totalorder %s28, 0
        // Predicated region
        $region61: #{tpu_custom_call.1} parent=47 // pred_check
          %p449 = pneg %p448
        $region62: #{tpu_custom_call.1} parent=47 // pred_check_branch
          %451 = sbr.rel (%p449) target = $region64
        $region63: #{tpu_custom_call.1} parent=47 // pred_region
          %v452 = vld [vmem:[#allocation3] sm:$0xff]
          %v453 = vld [vmem:[#allocation3 + $0x8] sm:$0xff]
          %v454 = vld [vmem:[#allocation3 + $0x10] sm:$0xff]
          %v455 = vld [vmem:[#allocation3 + $0x18] sm:$0xff]
          %v456 = vld [vmem:[#allocation3 + $0x20] sm:$0xff]
          %v457 = vld [vmem:[#allocation3 + $0x28] sm:$0xff]
          %v458 = vld [vmem:[#allocation3 + $0x30] sm:$0xff]
          %v459 = vld [vmem:[#allocation3 + $0x38] sm:$0xff]
          %v460 = vld [vmem:[#allocation3 + $0x40] sm:$0xff]
          %v461 = vld [vmem:[#allocation3 + $0x48] sm:$0xff]
          %v462 = vld [vmem:[#allocation3 + $0x50] sm:$0xff]
          %v463 = vld [vmem:[#allocation3 + $0x58] sm:$0xff]
          %v464 = vld [vmem:[#allocation3 + $0x60] sm:$0xff]
          %v465 = vld [vmem:[#allocation3 + $0x68] sm:$0xff]
          %v466 = vld [vmem:[#allocation3 + $0x70] sm:$0xff]
          %v467 = vld [vmem:[#allocation3 + $0x78] sm:$0xff]
          %v468 = vld [vmem:[%s372] sm:$0xf]
          %v469 = vld [vmem:[%s372 + $0x4] sm:$0xf]
          %v470 = vld [vmem:[%s372 + $0x8] sm:$0xf]
          %v471 = vld [vmem:[%s372 + $0xc] sm:$0xf]
          %v472 = vld [vmem:[%s372 + $0x10] sm:$0xf]
          %v473 = vld [vmem:[%s372 + $0x14] sm:$0xf]
          %v474 = vld [vmem:[%s372 + $0x18] sm:$0xf]
          %v475 = vld [vmem:[%s372 + $0x1c] sm:$0xf]
          %v476 = vld [vmem:[%s372 + $0x20] sm:$0xf]
          %v477 = vld [vmem:[%s372 + $0x24] sm:$0xf]
          %v478 = vld [vmem:[%s372 + $0x28] sm:$0xf]
          %v479 = vld [vmem:[%s372 + $0x2c] sm:$0xf]
          %v480 = vld [vmem:[%s372 + $0x30] sm:$0xf]
          %v481 = vld [vmem:[%s372 + $0x34] sm:$0xf]
          %v482 = vld [vmem:[%s372 + $0x38] sm:$0xf]
          %v483 = vld [vmem:[%s372 + $0x3c] sm:$0xf]
          %v500 = vunpack.c.l.b16 %v468
          %v501 = vunpack.c.l.b16 %v469
          %v502 = vunpack.c.l.b16 %v470
          %v503 = vunpack.c.l.b16 %v471
          %v504 = vunpack.c.l.b16 %v472
          %v505 = vunpack.c.l.b16 %v473
          %v506 = vunpack.c.l.b16 %v474
          %v507 = vunpack.c.l.b16 %v475
          %v508 = vunpack.c.l.b16 %v476
          %v509 = vunpack.c.l.b16 %v477
          %v510 = vunpack.c.l.b16 %v478
          %v511 = vunpack.c.l.b16 %v479
          %v512 = vunpack.c.l.b16 %v480
          %v513 = vunpack.c.l.b16 %v481
          %v514 = vunpack.c.l.b16 %v482
          %v515 = vunpack.c.l.b16 %v483
          %v516 = vpack.c.b16 %v501, %v500
          %v517 = vpack.c.b16 %v503, %v502
          %v518 = vpack.c.b16 %v505, %v504
          %v519 = vpack.c.b16 %v507, %v506
          %v520 = vpack.c.b16 %v509, %v508
          %v521 = vpack.c.b16 %v511, %v510
          %v522 = vpack.c.b16 %v513, %v512
          %v523 = vpack.c.b16 %v515, %v514
          %532 = vmatpush.bf16.msra.mxu0 %v523
          %533 = vmatpush.bf16.msra.mxu0 %v522
          %534 = vmatpush.bf16.msra.mxu0 %v521
          %535 = vmatpush.bf16.msra.mxu0 %v520
          %536 = vmatpush.bf16.msra.mxu0 %v519
          %537 = vmatpush.bf16.msra.mxu0 %v518
          %538 = vmatpush.bf16.msra.mxu0 %v517
          %539 = vmatpush.bf16.msra.mxu0 %v516
          %540 = vmatmul.bf16.gmra.mxu0 %v440
          %v541 = vpop.f32.mrf.mxu0
          %v542 = vadd.f32 0.0, %v541
          %v543 = vpop.f32.mrf.mxu0
          %v544 = vadd.f32 0.0, %v543
          %545 = vmatmul.bf16.gmra.mxu0 %v441
          %v546 = vpop.f32.mrf.mxu0
          %v547 = vadd.f32 0.0, %v546
          %v548 = vpop.f32.mrf.mxu0
          %v549 = vadd.f32 0.0, %v548
          %550 = vmatmul.bf16.gmra.mxu0 %v442
          %v551 = vpop.f32.mrf.mxu0
          %v552 = vadd.f32 0.0, %v551
          %v553 = vpop.f32.mrf.mxu0
          %v554 = vadd.f32 0.0, %v553
          %555 = vmatmul.bf16.gmra.mxu0 %v443
          %v556 = vpop.f32.mrf.mxu0
          %v557 = vadd.f32 0.0, %v556
          %v558 = vpop.f32.mrf.mxu0
          %v559 = vadd.f32 0.0, %v558
          %560 = vmatmul.bf16.gmra.mxu0 %v444
          %v561 = vpop.f32.mrf.mxu0
          %v562 = vadd.f32 0.0, %v561
          %v563 = vpop.f32.mrf.mxu0
          %v564 = vadd.f32 0.0, %v563
          %565 = vmatmul.bf16.gmra.mxu0 %v445
          %v566 = vpop.f32.mrf.mxu0
          %v567 = vadd.f32 0.0, %v566
          %v568 = vpop.f32.mrf.mxu0
          %v569 = vadd.f32 0.0, %v568
          %570 = vmatmul.bf16.gmra.mxu0 %v446
          %v571 = vpop.f32.mrf.mxu0
          %v572 = vadd.f32 0.0, %v571
          %v573 = vpop.f32.mrf.mxu0
          %v574 = vadd.f32 0.0, %v573
          %575 = vmatmul.bf16.gmra.mxu0 %v447
          %v576 = vpop.f32.mrf.mxu0
          %v577 = vadd.f32 0.0, %v576
          %v578 = vpop.f32.mrf.mxu0
          %v579 = vadd.f32 0.0, %v578
          %580 = vdwg.mxu0
          %v581 = vadd.f32 %v452, %v542
          %v582 = vadd.f32 %v453, %v544
          %v583 = vadd.f32 %v454, %v547
          %v584 = vadd.f32 %v455, %v549
          %v585 = vadd.f32 %v456, %v552
          %v586 = vadd.f32 %v457, %v554
          %v587 = vadd.f32 %v458, %v557
          %v588 = vadd.f32 %v459, %v559
          %v589 = vadd.f32 %v460, %v562
          %v590 = vadd.f32 %v461, %v564
          %v591 = vadd.f32 %v462, %v567
          %v592 = vadd.f32 %v463, %v569
          %v593 = vadd.f32 %v464, %v572
          %v594 = vadd.f32 %v465, %v574
          %v595 = vadd.f32 %v466, %v577
          %v596 = vadd.f32 %v467, %v579
          %597 = vst [vmem:[#allocation3] sm:$0xff] %v581
          %598 = vst [vmem:[#allocation3 + $0x8] sm:$0xff] %v582
          %599 = vst [vmem:[#allocation3 + $0x10] sm:$0xff] %v583
          %600 = vst [vmem:[#allocation3 + $0x18] sm:$0xff] %v584
          %601 = vst [vmem:[#allocation3 + $0x20] sm:$0xff] %v585
          %602 = vst [vmem:[#allocation3 + $0x28] sm:$0xff] %v586
          %603 = vst [vmem:[#allocation3 + $0x30] sm:$0xff] %v587
          %604 = vst [vmem:[#allocation3 + $0x38] sm:$0xff] %v588
          %605 = vst [vmem:[#allocation3 + $0x40] sm:$0xff] %v589
          %606 = vst [vmem:[#allocation3 + $0x48] sm:$0xff] %v590
          %607 = vst [vmem:[#allocation3 + $0x50] sm:$0xff] %v591
          %608 = vst [vmem:[#allocation3 + $0x58] sm:$0xff] %v592
          %609 = vst [vmem:[#allocation3 + $0x60] sm:$0xff] %v593
          %610 = vst [vmem:[#allocation3 + $0x68] sm:$0xff] %v594
          %611 = vst [vmem:[#allocation3 + $0x70] sm:$0xff] %v595
          %612 = vst [vmem:[#allocation3 + $0x78] sm:$0xff] %v596
        $region64: #{tpu_custom_call.1} parent=47 // pred_fallthru
          _
        %p613 = scmp.eq.s32.totalorder %s28, 1
        // Predicated region
        $region65: #{tpu_custom_call.1} parent=47 // pred_check
          %p614 = pneg %p613
        $region66: #{tpu_custom_call.1} parent=47 // pred_check_branch
          %616 = sbr.rel (%p614) target = $region68
        $region67: #{tpu_custom_call.1} parent=47 // pred_region
          %s617 = smul.u32 %s30, 128
          %v618 = vld [vmem:[#allocation3] sm:$0xff]
          %v619 = vld [vmem:[#allocation3 + $0x8] sm:$0xff]
          %v620 = vld [vmem:[#allocation3 + $0x10] sm:$0xff]
          %v621 = vld [vmem:[#allocation3 + $0x18] sm:$0xff]
          %v622 = vld [vmem:[#allocation3 + $0x20] sm:$0xff]
          %v623 = vld [vmem:[#allocation3 + $0x28] sm:$0xff]
          %v624 = vld [vmem:[#allocation3 + $0x30] sm:$0xff]
          %v625 = vld [vmem:[#allocation3 + $0x38] sm:$0xff]
          %v626 = vld [vmem:[#allocation3 + $0x40] sm:$0xff]
          %v627 = vld [vmem:[#allocation3 + $0x48] sm:$0xff]
          %v628 = vld [vmem:[#allocation3 + $0x50] sm:$0xff]
          %v629 = vld [vmem:[#allocation3 + $0x58] sm:$0xff]
          %v630 = vld [vmem:[#allocation3 + $0x60] sm:$0xff]
          %v631 = vld [vmem:[#allocation3 + $0x68] sm:$0xff]
          %v632 = vld [vmem:[#allocation3 + $0x70] sm:$0xff]
          %v633 = vld [vmem:[#allocation3 + $0x78] sm:$0xff]
          %s634 = sshra.s32 %s617, 3
          %s635 = sand.u32 %s617, 7
          %s636 = smul.addr %s634, 4
          %s637 = scalar_lea.vmem [#allocation2], %s636
          %v638 = vld [vmem:[%s637] sm:$0xf]
          %v639 = vld [vmem:[%s637 + $0x4] sm:$0xf]
          %v640 = vld [vmem:[%s637 + $0x8] sm:$0xf]
          %v641 = vld [vmem:[%s637 + $0xc] sm:$0xf]
          %v642 = vld [vmem:[%s637 + $0x10] sm:$0xf]
          %v643 = vld [vmem:[%s637 + $0x14] sm:$0xf]
          %v644 = vld [vmem:[%s637 + $0x18] sm:$0xf]
          %v645 = vld [vmem:[%s637 + $0x1c] sm:$0xf]
          %v646 = vld [vmem:[%s637 + $0x20] sm:$0xf]
          %v647 = vld [vmem:[%s637 + $0x24] sm:$0xf]
          %v648 = vld [vmem:[%s637 + $0x28] sm:$0xf]
          %v649 = vld [vmem:[%s637 + $0x2c] sm:$0xf]
          %v650 = vld [vmem:[%s637 + $0x30] sm:$0xf]
          %v651 = vld [vmem:[%s637 + $0x34] sm:$0xf]
          %v652 = vld [vmem:[%s637 + $0x38] sm:$0xf]
          %v653 = vld [vmem:[%s637 + $0x3c] sm:$0xf]
          %v670 = vunpack.c.l.b16 %v638
          %v671 = vunpack.c.l.b16 %v639
          %v672 = vunpack.c.l.b16 %v640
          %v673 = vunpack.c.l.b16 %v641
          %v674 = vunpack.c.l.b16 %v642
          %v675 = vunpack.c.l.b16 %v643
          %v676 = vunpack.c.l.b16 %v644
          %v677 = vunpack.c.l.b16 %v645
          %v678 = vunpack.c.l.b16 %v646
          %v679 = vunpack.c.l.b16 %v647
          %v680 = vunpack.c.l.b16 %v648
          %v681 = vunpack.c.l.b16 %v649
          %v682 = vunpack.c.l.b16 %v650
          %v683 = vunpack.c.l.b16 %v651
          %v684 = vunpack.c.l.b16 %v652
          %v685 = vunpack.c.l.b16 %v653
          %v686 = vpack.c.b16 %v671, %v670
          %v687 = vpack.c.b16 %v673, %v672
          %v688 = vpack.c.b16 %v675, %v674
          %v689 = vpack.c.b16 %v677, %v676
          %v690 = vpack.c.b16 %v679, %v678
          %v691 = vpack.c.b16 %v681, %v680
          %v692 = vpack.c.b16 %v683, %v682
          %v693 = vpack.c.b16 %v685, %v684
          %702 = vmatpush.bf16.msra.mxu0 %v693
          %703 = vmatpush.bf16.msra.mxu0 %v692
          %704 = vmatpush.bf16.msra.mxu0 %v691
          %705 = vmatpush.bf16.msra.mxu0 %v690
          %706 = vmatpush.bf16.msra.mxu0 %v689
          %707 = vmatpush.bf16.msra.mxu0 %v688
          %708 = vmatpush.bf16.msra.mxu0 %v687
          %709 = vmatpush.bf16.msra.mxu0 %v686
          %710 = vmatmul.bf16.gmra.mxu0 %v440
          %v711 = vpop.f32.mrf.mxu0
          %v712 = vadd.f32 0.0, %v711
          %v713 = vpop.f32.mrf.mxu0
          %v714 = vadd.f32 0.0, %v713
          %715 = vmatmul.bf16.gmra.mxu0 %v441
          %v716 = vpop.f32.mrf.mxu0
          %v717 = vadd.f32 0.0, %v716
          %v718 = vpop.f32.mrf.mxu0
          %v719 = vadd.f32 0.0, %v718
          %720 = vmatmul.bf16.gmra.mxu0 %v442
          %v721 = vpop.f32.mrf.mxu0
          %v722 = vadd.f32 0.0, %v721
          %v723 = vpop.f32.mrf.mxu0
          %v724 = vadd.f32 0.0, %v723
          %725 = vmatmul.bf16.gmra.mxu0 %v443
          %v726 = vpop.f32.mrf.mxu0
          %v727 = vadd.f32 0.0, %v726
          %v728 = vpop.f32.mrf.mxu0
          %v729 = vadd.f32 0.0, %v728
          %730 = vmatmul.bf16.gmra.mxu0 %v444
          %v731 = vpop.f32.mrf.mxu0
          %v732 = vadd.f32 0.0, %v731
          %v733 = vpop.f32.mrf.mxu0
          %v734 = vadd.f32 0.0, %v733
          %735 = vmatmul.bf16.gmra.mxu0 %v445
          %v736 = vpop.f32.mrf.mxu0
          %v737 = vadd.f32 0.0, %v736
          %v738 = vpop.f32.mrf.mxu0
          %v739 = vadd.f32 0.0, %v738
          %740 = vmatmul.bf16.gmra.mxu0 %v446
          %v741 = vpop.f32.mrf.mxu0
          %v742 = vadd.f32 0.0, %v741
          %v743 = vpop.f32.mrf.mxu0
          %v744 = vadd.f32 0.0, %v743
          %745 = vmatmul.bf16.gmra.mxu0 %v447
          %v746 = vpop.f32.mrf.mxu0
          %v747 = vadd.f32 0.0, %v746
          %v748 = vpop.f32.mrf.mxu0
          %v749 = vadd.f32 0.0, %v748
          %750 = vdwg.mxu0
          %v751 = vadd.f32 %v618, %v712
          %v752 = vadd.f32 %v619, %v714
          %v753 = vadd.f32 %v620, %v717
          %v754 = vadd.f32 %v621, %v719
          %v755 = vadd.f32 %v622, %v722
          %v756 = vadd.f32 %v623, %v724
          %v757 = vadd.f32 %v624, %v727
          %v758 = vadd.f32 %v625, %v729
          %v759 = vadd.f32 %v626, %v732
          %v760 = vadd.f32 %v627, %v734
          %v761 = vadd.f32 %v628, %v737
          %v762 = vadd.f32 %v629, %v739
          %v763 = vadd.f32 %v630, %v742
          %v764 = vadd.f32 %v631, %v744
          %v765 = vadd.f32 %v632, %v747
          %v766 = vadd.f32 %v633, %v749
          %767 = vst [vmem:[#allocation3] sm:$0xff] %v751
          %768 = vst [vmem:[#allocation3 + $0x8] sm:$0xff] %v752
          %769 = vst [vmem:[#allocation3 + $0x10] sm:$0xff] %v753
          %770 = vst [vmem:[#allocation3 + $0x18] sm:$0xff] %v754
          %771 = vst [vmem:[#allocation3 + $0x20] sm:$0xff] %v755
          %772 = vst [vmem:[#allocation3 + $0x28] sm:$0xff] %v756
          %773 = vst [vmem:[#allocation3 + $0x30] sm:$0xff] %v757
          %774 = vst [vmem:[#allocation3 + $0x38] sm:$0xff] %v758
          %775 = vst [vmem:[#allocation3 + $0x40] sm:$0xff] %v759
          %776 = vst [vmem:[#allocation3 + $0x48] sm:$0xff] %v760
          %777 = vst [vmem:[#allocation3 + $0x50] sm:$0xff] %v761
          %778 = vst [vmem:[#allocation3 + $0x58] sm:$0xff] %v762
          %779 = vst [vmem:[#allocation3 + $0x60] sm:$0xff] %v763
          %780 = vst [vmem:[#allocation3 + $0x68] sm:$0xff] %v764
          %781 = vst [vmem:[#allocation3 + $0x70] sm:$0xff] %v765
          %782 = vst [vmem:[#allocation3 + $0x78] sm:$0xff] %v766
        $region68: #{tpu_custom_call.1} parent=47 // pred_fallthru
          _
        // Predicated region
        $region69: #{tpu_custom_call.1} parent=47 // pred_check
          %p783 = pneg %p384
        $region70: #{tpu_custom_call.1} parent=47 // pred_check_branch
          %785 = sbr.rel (%p783) target = $region72
        $region71: #{tpu_custom_call.1} parent=47 // pred_region
          %v786 = vld [vmem:[%s380] sm:$0xff]
          %v787 = vld [vmem:[%s380 + $0x8] sm:$0xff]
          %v788 = vld [vmem:[%s380 + $0x10] sm:$0xff]
          %v789 = vld [vmem:[%s380 + $0x18] sm:$0xff]
          %v790 = vld [vmem:[%s380 + $0x20] sm:$0xff]
          %v791 = vld [vmem:[%s380 + $0x28] sm:$0xff]
          %v792 = vld [vmem:[%s380 + $0x30] sm:$0xff]
          %v793 = vld [vmem:[%s380 + $0x38] sm:$0xff]
          %v794 = vld [vmem:[%s380 + $0x40] sm:$0xff]
          %v795 = vld [vmem:[%s380 + $0x48] sm:$0xff]
          %v796 = vld [vmem:[%s380 + $0x50] sm:$0xff]
          %v797 = vld [vmem:[%s380 + $0x58] sm:$0xff]
          %v798 = vld [vmem:[%s380 + $0x60] sm:$0xff]
          %v799 = vld [vmem:[%s380 + $0x68] sm:$0xff]
          %v800 = vld [vmem:[%s380 + $0x70] sm:$0xff]
          %v801 = vld [vmem:[%s380 + $0x78] sm:$0xff]
          %v802 = vld [vmem:[#allocation3] sm:$0xff]
          %v803 = vld [vmem:[#allocation3 + $0x8] sm:$0xff]
          %v804 = vld [vmem:[#allocation3 + $0x10] sm:$0xff]
          %v805 = vld [vmem:[#allocation3 + $0x18] sm:$0xff]
          %v806 = vld [vmem:[#allocation3 + $0x20] sm:$0xff]
          %v807 = vld [vmem:[#allocation3 + $0x28] sm:$0xff]
          %v808 = vld [vmem:[#allocation3 + $0x30] sm:$0xff]
          %v809 = vld [vmem:[#allocation3 + $0x38] sm:$0xff]
          %v810 = vld [vmem:[#allocation3 + $0x40] sm:$0xff]
          %v811 = vld [vmem:[#allocation3 + $0x48] sm:$0xff]
          %v812 = vld [vmem:[#allocation3 + $0x50] sm:$0xff]
          %v813 = vld [vmem:[#allocation3 + $0x58] sm:$0xff]
          %v814 = vld [vmem:[#allocation3 + $0x60] sm:$0xff]
          %v815 = vld [vmem:[#allocation3 + $0x68] sm:$0xff]
          %v816 = vld [vmem:[#allocation3 + $0x70] sm:$0xff]
          %v817 = vld [vmem:[#allocation3 + $0x78] sm:$0xff]
          %819 = vset.pattern.permute.xlu0 0
          %820 = vperm.xlu0 %819, %v786
          %v821 = vpop.permute.xlu0 %820
          %824 = vset.pattern.permute.xlu0 0
          %825 = vperm.xlu0 %824, %v787
          %v826 = vpop.permute.xlu0 %825
          %829 = vset.pattern.permute.xlu0 0
          %830 = vperm.xlu0 %829, %v788
          %v831 = vpop.permute.xlu0 %830
          %834 = vset.pattern.permute.xlu0 0
          %835 = vperm.xlu0 %834, %v789
          %v836 = vpop.permute.xlu0 %835
          %839 = vset.pattern.permute.xlu0 0
          %840 = vperm.xlu0 %839, %v790
          %v841 = vpop.permute.xlu0 %840
          %844 = vset.pattern.permute.xlu0 0
          %845 = vperm.xlu0 %844, %v791
          %v846 = vpop.permute.xlu0 %845
          %849 = vset.pattern.permute.xlu0 0
          %850 = vperm.xlu0 %849, %v792
          %v851 = vpop.permute.xlu0 %850
          %854 = vset.pattern.permute.xlu0 0
          %855 = vperm.xlu0 %854, %v793
          %v856 = vpop.permute.xlu0 %855
          %859 = vset.pattern.permute.xlu0 0
          %860 = vperm.xlu0 %859, %v794
          %v861 = vpop.permute.xlu0 %860
          %864 = vset.pattern.permute.xlu0 0
          %865 = vperm.xlu0 %864, %v795
          %v866 = vpop.permute.xlu0 %865
          %869 = vset.pattern.permute.xlu0 0
          %870 = vperm.xlu0 %869, %v796
          %v871 = vpop.permute.xlu0 %870
          %874 = vset.pattern.permute.xlu0 0
          %875 = vperm.xlu0 %874, %v797
          %v876 = vpop.permute.xlu0 %875
          %879 = vset.pattern.permute.xlu0 0
          %880 = vperm.xlu0 %879, %v798
          %v881 = vpop.permute.xlu0 %880
          %884 = vset.pattern.permute.xlu0 0
          %885 = vperm.xlu0 %884, %v799
          %v886 = vpop.permute.xlu0 %885
          %889 = vset.pattern.permute.xlu0 0
          %890 = vperm.xlu0 %889, %v800
          %v891 = vpop.permute.xlu0 %890
          %894 = vset.pattern.permute.xlu0 0
          %895 = vperm.xlu0 %894, %v801
          %v896 = vpop.permute.xlu0 %895
          %v898 = vmul.f32 %v821, %v802
          %v899 = vmul.f32 %v826, %v803
          %v900 = vmul.f32 %v831, %v804
          %v901 = vmul.f32 %v836, %v805
          %v902 = vmul.f32 %v841, %v806
          %v903 = vmul.f32 %v846, %v807
          %v904 = vmul.f32 %v851, %v808
          %v905 = vmul.f32 %v856, %v809
          %v906 = vmul.f32 %v861, %v810
          %v907 = vmul.f32 %v866, %v811
          %v908 = vmul.f32 %v871, %v812
          %v909 = vmul.f32 %v876, %v813
          %v910 = vmul.f32 %v881, %v814
          %v911 = vmul.f32 %v886, %v815
          %v912 = vmul.f32 %v891, %v816
          %v913 = vmul.f32 %v896, %v817
          %v914 = vpack.c.bf16 %v899, %v898
          %v915 = vpack.c.bf16 %v901, %v900
          %v916 = vpack.c.bf16 %v903, %v902
          %v917 = vpack.c.bf16 %v905, %v904
          %v918 = vpack.c.bf16 %v907, %v906
          %v919 = vpack.c.bf16 %v909, %v908
          %v920 = vpack.c.bf16 %v911, %v910
          %v921 = vpack.c.bf16 %v913, %v912
          %s922 = smul.u32 %s29, 128
          // Predicated region
          $region73: #{tpu_custom_call.1} parent=71 // pred_check
            %p923 = pneg %p448
          $region74: #{tpu_custom_call.1} parent=71 // pred_check_branch
            %925 = sbr.rel (%p923) target = $region76
          $region75: #{tpu_custom_call.1} parent=71 // pred_region
            %v926 = vld [vmem:[%s2] sm:$0xf]
            %v927 = vld [vmem:[%s2 + $0x4] sm:$0xf]
            %v928 = vld [vmem:[%s2 + $0x8] sm:$0xf]
            %v929 = vld [vmem:[%s2 + $0xc] sm:$0xf]
            %v930 = vld [vmem:[%s2 + $0x10] sm:$0xf]
            %v931 = vld [vmem:[%s2 + $0x14] sm:$0xf]
            %v932 = vld [vmem:[%s2 + $0x18] sm:$0xf]
            %v933 = vld [vmem:[%s2 + $0x1c] sm:$0xf]
            %v934 = vld [vmem:[%s2 + $0x20] sm:$0xf]
            %v935 = vld [vmem:[%s2 + $0x24] sm:$0xf]
            %v936 = vld [vmem:[%s2 + $0x28] sm:$0xf]
            %v937 = vld [vmem:[%s2 + $0x2c] sm:$0xf]
            %v938 = vld [vmem:[%s2 + $0x30] sm:$0xf]
            %v939 = vld [vmem:[%s2 + $0x34] sm:$0xf]
            %v940 = vld [vmem:[%s2 + $0x38] sm:$0xf]
            %v941 = vld [vmem:[%s2 + $0x3c] sm:$0xf]
            %v942 = vld [vmem:[%s4] sm:$0x1]
            %v944 = vperm.slane %v942, 0
            %v962 = vunpack.c.l.b16 %v926
            %v963 = vunpack.c.l.b16 %v927
            %v964 = vunpack.c.l.b16 %v928
            %v965 = vunpack.c.l.b16 %v929
            %v966 = vunpack.c.l.b16 %v930
            %v967 = vunpack.c.l.b16 %v931
            %v968 = vunpack.c.l.b16 %v932
            %v969 = vunpack.c.l.b16 %v933
            %v970 = vunpack.c.l.b16 %v934
            %v971 = vunpack.c.l.b16 %v935
            %v972 = vunpack.c.l.b16 %v936
            %v973 = vunpack.c.l.b16 %v937
            %v974 = vunpack.c.l.b16 %v938
            %v975 = vunpack.c.l.b16 %v939
            %v976 = vunpack.c.l.b16 %v940
            %v977 = vunpack.c.l.b16 %v941
            %v978 = vpack.c.b16 %v963, %v962
            %v979 = vpack.c.b16 %v965, %v964
            %v980 = vpack.c.b16 %v967, %v966
            %v981 = vpack.c.b16 %v969, %v968
            %v982 = vpack.c.b16 %v971, %v970
            %v983 = vpack.c.b16 %v973, %v972
            %v984 = vpack.c.b16 %v975, %v974
            %v985 = vpack.c.b16 %v977, %v976
            %994 = vmatpush.bf16.msra.mxu0 %v985
            %995 = vmatpush.bf16.msra.mxu0 %v984
            %996 = vmatpush.bf16.msra.mxu0 %v983
            %997 = vmatpush.bf16.msra.mxu0 %v982
            %998 = vmatpush.bf16.msra.mxu0 %v981
            %999 = vmatpush.bf16.msra.mxu0 %v980
            %1000 = vmatpush.bf16.msra.mxu0 %v979
            %1001 = vmatpush.bf16.msra.mxu0 %v978
            %1002 = vmatmul.bf16.gmra.mxu0 %v914
            %v1003 = vpop.f32.mrf.mxu0
            %v1004 = vadd.f32 %v944, %v1003
            %v1005 = vpop.f32.mrf.mxu0
            %v1006 = vadd.f32 %v944, %v1005
            %1007 = vmatmul.bf16.gmra.mxu0 %v915
            %v1008 = vpop.f32.mrf.mxu0
            %v1009 = vadd.f32 %v944, %v1008
            %v1010 = vpop.f32.mrf.mxu0
            %v1011 = vadd.f32 %v944, %v1010
            %1012 = vmatmul.bf16.gmra.mxu0 %v916
            %v1013 = vpop.f32.mrf.mxu0
            %v1014 = vadd.f32 %v944, %v1013
            %v1015 = vpop.f32.mrf.mxu0
            %v1016 = vadd.f32 %v944, %v1015
            %1017 = vmatmul.bf16.gmra.mxu0 %v917
            %v1018 = vpop.f32.mrf.mxu0
            %v1019 = vadd.f32 %v944, %v1018
            %v1020 = vpop.f32.mrf.mxu0
            %v1021 = vadd.f32 %v944, %v1020
            %1022 = vmatmul.bf16.gmra.mxu0 %v918
            %v1023 = vpop.f32.mrf.mxu0
            %v1024 = vadd.f32 %v944, %v1023
            %v1025 = vpop.f32.mrf.mxu0
            %v1026 = vadd.f32 %v944, %v1025
            %1027 = vmatmul.bf16.gmra.mxu0 %v919
            %v1028 = vpop.f32.mrf.mxu0
            %v1029 = vadd.f32 %v944, %v1028
            %v1030 = vpop.f32.mrf.mxu0
            %v1031 = vadd.f32 %v944, %v1030
            %1032 = vmatmul.bf16.gmra.mxu0 %v920
            %v1033 = vpop.f32.mrf.mxu0
            %v1034 = vadd.f32 %v944, %v1033
            %v1035 = vpop.f32.mrf.mxu0
            %v1036 = vadd.f32 %v944, %v1035
            %1037 = vmatmul.bf16.gmra.mxu0 %v921
            %v1038 = vpop.f32.mrf.mxu0
            %v1039 = vadd.f32 %v944, %v1038
            %v1040 = vpop.f32.mrf.mxu0
            %v1041 = vadd.f32 %v944, %v1040
            %1042 = vdwg.mxu0
            %v1043 = vmax.f32 %v1004, 0.0
            %v1044 = vmax.f32 %v1006, 0.0
            %v1045 = vmax.f32 %v1009, 0.0
            %v1046 = vmax.f32 %v1011, 0.0
            %v1047 = vmax.f32 %v1014, 0.0
            %v1048 = vmax.f32 %v1016, 0.0
            %v1049 = vmax.f32 %v1019, 0.0
            %v1050 = vmax.f32 %v1021, 0.0
            %v1051 = vmax.f32 %v1024, 0.0
            %v1052 = vmax.f32 %v1026, 0.0
            %v1053 = vmax.f32 %v1029, 0.0
            %v1054 = vmax.f32 %v1031, 0.0
            %v1055 = vmax.f32 %v1034, 0.0
            %v1056 = vmax.f32 %v1036, 0.0
            %v1057 = vmax.f32 %v1039, 0.0
            %v1058 = vmax.f32 %v1041, 0.0
            %v1059 = vmul.f32 %v821, %v1043
            %v1060 = vmul.f32 %v826, %v1044
            %v1061 = vmul.f32 %v831, %v1045
            %v1062 = vmul.f32 %v836, %v1046
            %v1063 = vmul.f32 %v841, %v1047
            %v1064 = vmul.f32 %v846, %v1048
            %v1065 = vmul.f32 %v851, %v1049
            %v1066 = vmul.f32 %v856, %v1050
            %v1067 = vmul.f32 %v861, %v1051
            %v1068 = vmul.f32 %v866, %v1052
            %v1069 = vmul.f32 %v871, %v1053
            %v1070 = vmul.f32 %v876, %v1054
            %v1071 = vmul.f32 %v881, %v1055
            %v1072 = vmul.f32 %v886, %v1056
            %v1073 = vmul.f32 %v891, %v1057
            %v1074 = vmul.f32 %v896, %v1058
            %v1075 = vpack.c.bf16 %v1059, %v1059
            %v1076 = vpack.c.bf16 %v1060, %v1060
            %v1077 = vpack.c.bf16 %v1061, %v1061
            %v1078 = vpack.c.bf16 %v1062, %v1062
            %v1079 = vpack.c.bf16 %v1063, %v1063
            %v1080 = vpack.c.bf16 %v1064, %v1064
            %v1081 = vpack.c.bf16 %v1065, %v1065
            %v1082 = vpack.c.bf16 %v1066, %v1066
            %v1083 = vpack.c.bf16 %v1067, %v1067
            %v1084 = vpack.c.bf16 %v1068, %v1068
            %v1085 = vpack.c.bf16 %v1069, %v1069
            %v1086 = vpack.c.bf16 %v1070, %v1070
            %v1087 = vpack.c.bf16 %v1071, %v1071
            %v1088 = vpack.c.bf16 %v1072, %v1072
            %v1089 = vpack.c.bf16 %v1073, %v1073
            %v1090 = vpack.c.bf16 %v1074, %v1074
            %s1091 = sshra.s32 %s922, 3
            %s1092 = sand.u32 %s922, 7
            %s1093 = smul.addr %s1091, 4
            %s1094 = scalar_lea.vmem [#allocation2], %s1093
            %1095 = vst [vmem:[%s1094] sm:$0xf] %v1075
            %1096 = vst [vmem:[%s1094 + $0x4] sm:$0xf] %v1076
            %1097 = vst [vmem:[%s1094 + $0x8] sm:$0xf] %v1077
            %1098 = vst [vmem:[%s1094 + $0xc] sm:$0xf] %v1078
            %1099 = vst [vmem:[%s1094 + $0x10] sm:$0xf] %v1079
            %1100 = vst [vmem:[%s1094 + $0x14] sm:$0xf] %v1080
            %1101 = vst [vmem:[%s1094 + $0x18] sm:$0xf] %v1081
            %1102 = vst [vmem:[%s1094 + $0x1c] sm:$0xf] %v1082
            %1103 = vst [vmem:[%s1094 + $0x20] sm:$0xf] %v1083
            %1104 = vst [vmem:[%s1094 + $0x24] sm:$0xf] %v1084
            %1105 = vst [vmem:[%s1094 + $0x28] sm:$0xf] %v1085
            %1106 = vst [vmem:[%s1094 + $0x2c] sm:$0xf] %v1086
            %1107 = vst [vmem:[%s1094 + $0x30] sm:$0xf] %v1087
            %1108 = vst [vmem:[%s1094 + $0x34] sm:$0xf] %v1088
            %1109 = vst [vmem:[%s1094 + $0x38] sm:$0xf] %v1089
            %1110 = vst [vmem:[%s1094 + $0x3c] sm:$0xf] %v1090
          $region76: #{tpu_custom_call.1} parent=71 // pred_fallthru
            _
          // Predicated region
          $region77: #{tpu_custom_call.1} parent=71 // pred_check
            %p1111 = pneg %p613
          $region78: #{tpu_custom_call.1} parent=71 // pred_check_branch
            %1113 = sbr.rel (%p1111) target = $region80
          $region79: #{tpu_custom_call.1} parent=71 // pred_region
            %v1114 = vld [vmem:[#allocation7] sm:$0xf]
            %v1115 = vld [vmem:[#allocation7 + $0x4] sm:$0xf]
            %v1116 = vld [vmem:[#allocation7 + $0x8] sm:$0xf]
            %v1117 = vld [vmem:[#allocation7 + $0xc] sm:$0xf]
            %v1118 = vld [vmem:[#allocation7 + $0x10] sm:$0xf]
            %v1119 = vld [vmem:[#allocation7 + $0x14] sm:$0xf]
            %v1120 = vld [vmem:[#allocation7 + $0x18] sm:$0xf]
            %v1121 = vld [vmem:[#allocation7 + $0x1c] sm:$0xf]
            %v1122 = vld [vmem:[#allocation7 + $0x20] sm:$0xf]
            %v1123 = vld [vmem:[#allocation7 + $0x24] sm:$0xf]
            %v1124 = vld [vmem:[#allocation7 + $0x28] sm:$0xf]
            %v1125 = vld [vmem:[#allocation7 + $0x2c] sm:$0xf]
            %v1126 = vld [vmem:[#allocation7 + $0x30] sm:$0xf]
            %v1127 = vld [vmem:[#allocation7 + $0x34] sm:$0xf]
            %v1128 = vld [vmem:[#allocation7 + $0x38] sm:$0xf]
            %v1129 = vld [vmem:[#allocation7 + $0x3c] sm:$0xf]
            %v1130 = vld [vmem:[%s5] sm:$0x1]
            %v1132 = vperm.slane %v1130, 0
            %v1150 = vunpack.c.l.b16 %v1114
            %v1151 = vunpack.c.l.b16 %v1115
            %v1152 = vunpack.c.l.b16 %v1116
            %v1153 = vunpack.c.l.b16 %v1117
            %v1154 = vunpack.c.l.b16 %v1118
            %v1155 = vunpack.c.l.b16 %v1119
            %v1156 = vunpack.c.l.b16 %v1120
            %v1157 = vunpack.c.l.b16 %v1121
            %v1158 = vunpack.c.l.b16 %v1122
            %v1159 = vunpack.c.l.b16 %v1123
            %v1160 = vunpack.c.l.b16 %v1124
            %v1161 = vunpack.c.l.b16 %v1125
            %v1162 = vunpack.c.l.b16 %v1126
            %v1163 = vunpack.c.l.b16 %v1127
            %v1164 = vunpack.c.l.b16 %v1128
            %v1165 = vunpack.c.l.b16 %v1129
            %v1166 = vpack.c.b16 %v1151, %v1150
            %v1167 = vpack.c.b16 %v1153, %v1152
            %v1168 = vpack.c.b16 %v1155, %v1154
            %v1169 = vpack.c.b16 %v1157, %v1156
            %v1170 = vpack.c.b16 %v1159, %v1158
            %v1171 = vpack.c.b16 %v1161, %v1160
            %v1172 = vpack.c.b16 %v1163, %v1162
            %v1173 = vpack.c.b16 %v1165, %v1164
            %1182 = vmatpush.bf16.msra.mxu0 %v1173
            %1183 = vmatpush.bf16.msra.mxu0 %v1172
            %1184 = vmatpush.bf16.msra.mxu0 %v1171
            %1185 = vmatpush.bf16.msra.mxu0 %v1170
            %1186 = vmatpush.bf16.msra.mxu0 %v1169
            %1187 = vmatpush.bf16.msra.mxu0 %v1168
            %1188 = vmatpush.bf16.msra.mxu0 %v1167
            %1189 = vmatpush.bf16.msra.mxu0 %v1166
            %1190 = vmatmul.bf16.gmra.mxu0 %v914
            %v1191 = vpop.f32.mrf.mxu0
            %v1192 = vadd.f32 %v1132, %v1191
            %v1193 = vpop.f32.mrf.mxu0
            %v1194 = vadd.f32 %v1132, %v1193
            %1195 = vmatmul.bf16.gmra.mxu0 %v915
            %v1196 = vpop.f32.mrf.mxu0
            %v1197 = vadd.f32 %v1132, %v1196
            %v1198 = vpop.f32.mrf.mxu0
            %v1199 = vadd.f32 %v1132, %v1198
            %1200 = vmatmul.bf16.gmra.mxu0 %v916
            %v1201 = vpop.f32.mrf.mxu0
            %v1202 = vadd.f32 %v1132, %v1201
            %v1203 = vpop.f32.mrf.mxu0
            %v1204 = vadd.f32 %v1132, %v1203
            %1205 = vmatmul.bf16.gmra.mxu0 %v917
            %v1206 = vpop.f32.mrf.mxu0
            %v1207 = vadd.f32 %v1132, %v1206
            %v1208 = vpop.f32.mrf.mxu0
            %v1209 = vadd.f32 %v1132, %v1208
            %1210 = vmatmul.bf16.gmra.mxu0 %v918
            %v1211 = vpop.f32.mrf.mxu0
            %v1212 = vadd.f32 %v1132, %v1211
            %v1213 = vpop.f32.mrf.mxu0
            %v1214 = vadd.f32 %v1132, %v1213
            %1215 = vmatmul.bf16.gmra.mxu0 %v919
            %v1216 = vpop.f32.mrf.mxu0
            %v1217 = vadd.f32 %v1132, %v1216
            %v1218 = vpop.f32.mrf.mxu0
            %v1219 = vadd.f32 %v1132, %v1218
            %1220 = vmatmul.bf16.gmra.mxu0 %v920
            %v1221 = vpop.f32.mrf.mxu0
            %v1222 = vadd.f32 %v1132, %v1221
            %v1223 = vpop.f32.mrf.mxu0
            %v1224 = vadd.f32 %v1132, %v1223
            %1225 = vmatmul.bf16.gmra.mxu0 %v921
            %v1226 = vpop.f32.mrf.mxu0
            %v1227 = vadd.f32 %v1132, %v1226
            %v1228 = vpop.f32.mrf.mxu0
            %v1229 = vadd.f32 %v1132, %v1228
            %1230 = vdwg.mxu0
            %1231 = vst [vmem:[%s364] sm:$0xff] %v1192
            %1232 = vst [vmem:[%s364 + $0x8] sm:$0xff] %v1194
            %1233 = vst [vmem:[%s364 + $0x10] sm:$0xff] %v1197
            %1234 = vst [vmem:[%s364 + $0x18] sm:$0xff] %v1199
            %1235 = vst [vmem:[%s364 + $0x20] sm:$0xff] %v1202
            %1236 = vst [vmem:[%s364 + $0x28] sm:$0xff] %v1204
            %1237 = vst [vmem:[%s364 + $0x30] sm:$0xff] %v1207
            %1238 = vst [vmem:[%s364 + $0x38] sm:$0xff] %v1209
            %1239 = vst [vmem:[%s364 + $0x40] sm:$0xff] %v1212
            %1240 = vst [vmem:[%s364 + $0x48] sm:$0xff] %v1214
            %1241 = vst [vmem:[%s364 + $0x50] sm:$0xff] %v1217
            %1242 = vst [vmem:[%s364 + $0x58] sm:$0xff] %v1219
            %1243 = vst [vmem:[%s364 + $0x60] sm:$0xff] %v1222
            %1244 = vst [vmem:[%s364 + $0x68] sm:$0xff] %v1224
            %1245 = vst [vmem:[%s364 + $0x70] sm:$0xff] %v1227
            %1246 = vst [vmem:[%s364 + $0x78] sm:$0xff] %v1229
          $region80: #{tpu_custom_call.1} parent=71 // pred_fallthru
            _
        $region72: #{tpu_custom_call.1} parent=47 // pred_fallthru
          _
        %s1247 = sand.u32 %s220, 1
        %s1248 = scalar_lea.sflag [#allocation6], %s1247
        %s1249 = sand.u32 %s220, 1
        %s1250 = smul.addr %s1249, 128
        %s1251 = scalar_lea.vmem [#allocation9], %s1250
        // Predicated region
        $region81: #{tpu_custom_call.1} parent=47 // pred_check
          %p1252 = pneg %p230
        $region82: #{tpu_custom_call.1} parent=47 // pred_check_branch
          %1254 = sbr.rel (%p1252) target = $region84
        $region83: #{tpu_custom_call.1} parent=47 // pred_region
          %s1255 = smul.u32 %s28, %s29
          %s1256 = smul.u32 16, %s1255
          %1258 = vsyncadd %s1248, 0
          %s1259 = smul.addr %s1256, 8
          %s1260 = scalar_lea.hbm %s7, %s1259
          %s1261 = sshll.u32 %s1251, 4
          %s1262 = int_to_ptr.vmem [resolvable:$true] %s1261
          %s1263 = sshll.u32 %s1260, 4
          %s1264 = int_to_ptr.hbm [resolvable:$true] %s1263
          %1269 = dma.vmem_to_hbm [thread:$0]  %s1262, 2048, %s1264, %s1248, 128, 128, 8
        $region84: #{tpu_custom_call.1} parent=47 // pred_fallthru
          _
      $region48: #{tpu_custom_call.1} parent=5 // pred_fallthru
        _
      %p1270 = scmp.le.s32.totalorder 2, %s18
      // Predicated region
      $region85: #{tpu_custom_call.1} parent=5 // pred_check
        %p1271 = pneg %p1270
      $region86: #{tpu_custom_call.1} parent=5 // pred_check_branch
        %1273 = sbr.rel (%p1271) target = $region88
      $region87: #{tpu_custom_call.1} parent=5 // pred_region
        %s1274 = ssub.s32 %s18, 2
        // Predicated region
        $region89: #{tpu_custom_call.1} parent=87 // pred_check
          %p1275 = pneg %p236
        $region90: #{tpu_custom_call.1} parent=87 // pred_check_branch
          %1277 = sbr.rel (%p1275) target = $region92
        $region91: #{tpu_custom_call.1} parent=87 // pred_region
          %s1278 = sand.u32 %s221, 1
          %s1279 = scalar_lea.sflag [#allocation6], %s1278
          %s1280 = sand.u32 %s221, 1
          %s1281 = smul.addr %s1280, 128
          %s1282 = scalar_lea.vmem [#allocation9], %s1281
          %1284 = dma.done %s1279, 2048
        $region92: #{tpu_custom_call.1} parent=87 // pred_fallthru
          _
      $region88: #{tpu_custom_call.1} parent=5 // pred_fallthru
        _
    $region6: #{tpu_custom_call.1} parent=1 // loop_footer
      %s22 = sadd.s32 1, %s18
    $region7: #{tpu_custom_call.1} parent=1 // loop_footer_branch
      %17 = sbr.rel target = $region3
    $region8: #{tpu_custom_call.1} parent=1 // loop_exit
      _
    %1285 = vsyncpa [#allocation5], 1
    %s1286 = scalar_lea.sflag [#allocation5], 1
    %1287 = vsyncpa %s1286, 1
    %1288 = vsyncpa [#allocation8], 1
    %1289 = vsyncpa [#allocation6], 1
    %s1290 = scalar_lea.sflag [#allocation6], 1
    %1291 = vsyncpa %s1290, 1

</llo_original>
